<compile_context>
chip_gen: v7x
topology: tpu7x:2x2x1
jax: 0.10.0
libtpu: 0.0.40
codegen_flags: <defaults>
</compile_context>

<pallas_src>
import functools
import math

import jax
import jax.numpy as jnp
from jax.experimental import pallas as pl
from jax.experimental.pallas import tpu as pltpu


# ---------------------------------------------------------------------------
# Kernels
# ---------------------------------------------------------------------------
def _matmul_act_kernel(x_ref, w_ref, o_ref, *, relu):
    # x_ref: (1, Ci, HW)   w_ref: (Co, Ci)   o_ref: (1, Co, HW)
    y = jnp.dot(w_ref[...], x_ref[0], preferred_element_type=jnp.float32)
    if relu:
        y = jnp.maximum(y, 0.0)
    o_ref[0] = y.astype(o_ref.dtype)


def _matmul_bias_act_kernel(x_ref, w_ref, b_ref, o_ref, *, relu):
    # x_ref: (1, Ci, HW)   w_ref: (Co, Ci)   b_ref: (Co, 1)   o_ref: (1, Co, HW)
    y = jnp.dot(w_ref[...], x_ref[0], preferred_element_type=jnp.float32)
    y = y + b_ref[...]  # (Co, 1) broadcasts over lanes
    if relu:
        y = jnp.maximum(y, 0.0)
    o_ref[0] = y.astype(o_ref.dtype)


def _tap_matmul_kernel(x_ref, w_ref, o_ref, *, n_taps, relu):
    # x_ref: (n_taps, 1, Ci, HW)   w_ref: (n_taps, Co, Ci)   o_ref: (1, Co, HW)
    co, hw = o_ref.shape[1], o_ref.shape[2]
    acc = jnp.zeros((co, hw), jnp.float32)
    for t in range(n_taps):  # static unroll — 9 MXU matmuls accumulated in vregs
        acc = acc + jnp.dot(w_ref[t], x_ref[t, 0],
                            preferred_element_type=jnp.float32)
    if relu:
        acc = jnp.maximum(acc, 0.0)
    o_ref[0] = acc.astype(o_ref.dtype)


# ---------------------------------------------------------------------------
# Pallas wrappers
# ---------------------------------------------------------------------------
def _pointwise_conv(x_flat, w, bias=None, relu=False):
    """1x1 conv over (B, Ci, HW): out[b] = act(w @ x[b] (+ bias))."""
    B, Ci, HW = x_flat.shape
    Co = w.shape[0]

    if bias is None:
        kernel = functools.partial(_matmul_act_kernel, relu=relu)
        in_specs = [
            pl.BlockSpec((1, Ci, HW), lambda b: (b, 0, 0)),
            pl.BlockSpec((Co, Ci), lambda b: (0, 0)),
        ]
        operands = (x_flat, w)
    else:
        kernel = functools.partial(_matmul_bias_act_kernel, relu=relu)
        in_specs = [
            pl.BlockSpec((1, Ci, HW), lambda b: (b, 0, 0)),
            pl.BlockSpec((Co, Ci), lambda b: (0, 0)),
            pl.BlockSpec((Co, 1), lambda b: (0, 0)),
        ]
        operands = (x_flat, w, bias.reshape(Co, 1))

    return pl.pallas_call(
        kernel,
        out_shape=jax.ShapeDtypeStruct((B, Co, HW), x_flat.dtype),
        grid=(B,),
        in_specs=in_specs,
        out_specs=pl.BlockSpec((1, Co, HW), lambda b: (b, 0, 0)),
        compiler_params=pltpu.CompilerParams(
            dimension_semantics=("parallel",)),
    )(*operands)


def _dilated_conv3x3(x_flat, w, H, W, dilation, relu=True):
    """3x3 conv with dilation=padding=d over (B, Ci, H*W), 'same' output size."""
    B, Ci, HW = x_flat.shape
    Co = w.shape[0]
    d = int(dilation)

    # Wrapper-side layout plumbing: zero-pad and extract the 9 shifted views,
    # each flattened lane-dense to (B, Ci, H*W).
    x4 = x_flat.reshape(B, Ci, H, W)
    xp = jnp.pad(x4, ((0, 0), (0, 0), (d, d), (d, d)))
    taps = jnp.stack(
        [xp[:, :, kh * d:kh * d + H, kw * d:kw * d + W].reshape(B, Ci, HW)
         for kh in range(3) for kw in range(3)],
        axis=0)                                              # (9, B, Ci, HW)
    wt = jnp.transpose(w, (2, 3, 0, 1)).reshape(9, Co, Ci)   # (9, Co, Ci)

    kernel = functools.partial(_tap_matmul_kernel, n_taps=9, relu=relu)
    return pl.pallas_call(
        kernel,
        out_shape=jax.ShapeDtypeStruct((B, Co, HW), x_flat.dtype),
        grid=(B,),
        in_specs=[
            pl.BlockSpec((9, 1, Ci, HW), lambda b: (0, b, 0, 0)),
            pl.BlockSpec((9, Co, Ci), lambda b: (0, 0, 0)),
        ],
        out_specs=pl.BlockSpec((1, Co, HW), lambda b: (b, 0, 0)),
        compiler_params=pltpu.CompilerParams(
            dimension_semantics=("parallel",)),
    )(taps, wt)


# ---------------------------------------------------------------------------
# Module forward (GhostModule1)
# ---------------------------------------------------------------------------
def ghost_module1(x, w_primary, w_cheap, w_final, b_final, d_list, inter):
    """x: (B, Cin, H, W) -> (B, Cin, H, W), matching GhostModule1.forward."""
    B, Cin, H, W = x.shape
    HW = H * W
    t = x.reshape(B, Cin, HW)
    for i, d in enumerate(d_list):
        # GhostBlock: primary 1x1 conv + ReLU, cheap dilated 3x3 conv + ReLU, concat, slice.
        x1 = _pointwise_conv(t, w_primary[i], relu=True)
        x2 = _dilated_conv3x3(x1, w_cheap[i], H, W, d, relu=True)
        _t = jnp.concatenate([x1, x2], axis=1)[:, :inter, :]
        # Dense concat with the running feature map (channel-wise, pure layout).
        t = jnp.concatenate([_t, t], axis=1)
    out = _pointwise_conv(t, w_final, bias=b_final, relu=False)
    return out.reshape(B, Cin, H, W)


# ---------------------------------------------------------------------------
# Pure-JAX reference (mirrors the PyTorch module)
# ---------------------------------------------------------------------------
def _conv2d_ref(x, w, padding=0, dilation=1):
    return jax.lax.conv_general_dilated(
        x, w, window_strides=(1, 1),
        padding=[(padding, padding), (padding, padding)],
        rhs_dilation=(dilation, dilation),
        dimension_numbers=('NCHW', 'OIHW', 'NCHW'))


def ghost_module1_ref(x, w_primary, w_cheap, w_final, b_final, d_list, inter):
    t = x
    for i, d in enumerate(d_list):
        init_ch = w_primary[i].shape[0]
        x1 = jax.nn.relu(
            _conv2d_ref(t, w_primary[i].reshape(init_ch, t.shape[1], 1, 1)))
        x2 = jax.nn.relu(_conv2d_ref(x1, w_cheap[i], padding=d, dilation=d))
        _t = jnp.concatenate([x1, x2], axis=1)[:, :inter]
        t = jnp.concatenate([_t, t], axis=1)
    cout = w_final.shape[0]
    out = _conv2d_ref(t, w_final.reshape(cout, t.shape[1], 1, 1))
    return out + b_final.reshape(1, cout, 1, 1)


# ---------------------------------------------------------------------------
if __name__ == "__main__":
    B, inp, H, W = 2, 4, 16, 16
    inter = 4
    d_list = (1, 2)
    ratio = 2
    init_ch = math.ceil(inter / ratio)      # primary conv output channels
    new_ch = init_ch * (ratio - 1)          # cheap conv output channels

    key = jax.random.PRNGKey(0)
    keys = jax.random.split(key, 2 * len(d_list) + 3)

    w_primary, w_cheap = [], []
    c = inp
    ki = 0
    for d in d_list:
        w_primary.append(0.1 * jax.random.normal(keys[ki], (init_ch, c), jnp.float32)); ki += 1
        w_cheap.append(0.1 * jax.random.normal(keys[ki], (new_ch, init_ch, 3, 3), jnp.float32)); ki += 1
        c += inter
    w_final = 0.1 * jax.random.normal(keys[ki], (inp, c), jnp.float32); ki += 1
    b_final = 0.1 * jax.random.normal(keys[ki], (inp,), jnp.float32); ki += 1
    x = jax.random.normal(keys[ki], (B, inp, H, W), jnp.float32)

    w_primary = tuple(w_primary)
    w_cheap = tuple(w_cheap)

    fwd = jax.jit(ghost_module1, static_argnums=(5, 6))
    out = fwd(x, w_primary, w_cheap, w_final, b_final, d_list, inter)
    out = jax.block_until_ready(out)

    ref = ghost_module1_ref(x, w_primary, w_cheap, w_final, b_final, d_list, inter)
    assert out.shape == ref.shape == (B, inp, H, W)
    assert out.dtype == ref.dtype
    max_err = float(jnp.max(jnp.abs(out - ref)))
    assert jnp.allclose(out, ref, rtol=1e-4, atol=1e-4), f"max abs err {max_err}"

    print("KERNEL_OK")
</pallas_src>

<mosaic_0001>
module attributes {stable_mosaic.version = 11 : i64} {
  func.func @_matmul_act_kernel(%arg0: i32, %arg1: memref<1x4x256xf32, #tpu.memory_space<vmem>>, %arg2: memref<2x4xf32, #tpu.memory_space<vmem>>, %arg3: memref<1x2x256xf32, #tpu.memory_space<vmem>>) attributes {dimension_semantics = [#tpu.dimension_semantics<parallel>], iteration_bounds = array<i64: 2>, scalar_prefetch = 0 : i64, scratch_operands = 0 : i64, tpu.core_type = #tpu.core_type<tc>, window_params = [{transform_indices = @transform_0, window_bounds = array<i64: 1, 4, 256>}, {pipeline_mode = #tpu.pipeline_mode<synchronous>, transform_indices = @transform_1, window_bounds = array<i64: 2, 4>}, {transform_indices = @transform_2, window_bounds = array<i64: 1, 2, 256>}]} {
    %c0 = arith.constant 0 : index
    %c0_0 = arith.constant 0 : index
    %0 = vector.load %arg2[%c0, %c0_0] : memref<2x4xf32, #tpu.memory_space<vmem>>, vector<2x4xf32>
    %c0_1 = arith.constant 0 : index
    %c0_2 = arith.constant 0 : index
    %c0_3 = arith.constant 0 : index
    %1 = vector.load %arg1[%c0_1, %c0_2, %c0_3] : memref<1x4x256xf32, #tpu.memory_space<vmem>>, vector<1x4x256xf32>
    %2 = vector.shape_cast %1 : vector<1x4x256xf32> to vector<4x256xf32>
    %cst = arith.constant dense<0.000000e+00> : vector<2x256xf32>
    %3 = tpu.matmul %0, %2, %cst {dimension_numbers = #tpu.dot_dimension_numbers<[1], [0], [0], [1], [0, 0, 1, 1], [], []>} : vector<2x4xf32>, vector<4x256xf32>, vector<2x256xf32> -> vector<2x256xf32>
    %cst_4 = arith.constant 0.000000e+00 : f32
    %4 = vector.broadcast %cst_4 : f32 to vector<2x256xf32>
    %5 = arith.maximumf %3, %4 : vector<2x256xf32>
    %c0_5 = arith.constant 0 : index
    %c0_6 = arith.constant 0 : index
    %c0_7 = arith.constant 0 : index
    %6 = vector.load %arg3[%c0_5, %c0_6, %c0_7] : memref<1x2x256xf32, #tpu.memory_space<vmem>>, vector<1x2x256xf32>
    %7 = vector.shape_cast %6 : vector<1x2x256xf32> to vector<2x256xf32>
    %8 = vector.shape_cast %5 : vector<2x256xf32> to vector<1x2x256xf32>
    tpu.vector_store %arg3[%c0_5, %c0_6, %c0_7], %8 {strides = array<i32>} : memref<1x2x256xf32, #tpu.memory_space<vmem>>, vector<1x2x256xf32>,
    return
  }
  func.func @transform_0(%arg0: i32) -> (i32, i32, i32) {
    %c0_i32 = arith.constant 0 : i32
    %c0_i32_0 = arith.constant 0 : i32
    %c0_i32_1 = arith.constant 0 : i32
    return %arg0, %c0_i32, %c0_i32_0 : i32, i32, i32
  }
  func.func @transform_1(%arg0: i32) -> (i32, i32) {
    %c0_i32 = arith.constant 0 : i32
    %c0_i32_0 = arith.constant 0 : i32
    %c0_i32_1 = arith.constant 0 : i32
    return %c0_i32, %c0_i32_0 : i32, i32
  }
  func.func @transform_2(%arg0: i32) -> (i32, i32, i32) {
    %c0_i32 = arith.constant 0 : i32
    %c0_i32_0 = arith.constant 0 : i32
    %c0_i32_1 = arith.constant 0 : i32
    return %arg0, %c0_i32, %c0_i32_0 : i32, i32, i32
  }
}

module attributes {stable_mosaic.version = 11 : i64} {
  func.func @_tap_matmul_kernel(%arg0: i32, %arg1: memref<9x1x2x256xf32, #tpu.memory_space<vmem>>, %arg2: memref<9x2x2xf32, #tpu.memory_space<vmem>>, %arg3: memref<1x2x256xf32, #tpu.memory_space<vmem>>) attributes {dimension_semantics = [#tpu.dimension_semantics<parallel>], iteration_bounds = array<i64: 2>, scalar_prefetch = 0 : i64, scratch_operands = 0 : i64, tpu.core_type = #tpu.core_type<tc>, window_params = [{transform_indices = @transform_0, window_bounds = array<i64: 9, 1, 2, 256>}, {pipeline_mode = #tpu.pipeline_mode<synchronous>, transform_indices = @transform_1, window_bounds = array<i64: 9, 2, 2>}, {transform_indices = @transform_2, window_bounds = array<i64: 1, 2, 256>}]} {
    %cst = arith.constant 0.000000e+00 : f32
    %0 = vector.broadcast %cst : f32 to vector<2x256xf32>
    %c0 = arith.constant 0 : index
    %c0_0 = arith.constant 0 : index
    %c0_1 = arith.constant 0 : index
    %1 = vector.load %arg2[%c0, %c0_0, %c0_1] : memref<9x2x2xf32, #tpu.memory_space<vmem>>, vector<1x2x2xf32>
    %2 = vector.shape_cast %1 : vector<1x2x2xf32> to vector<2x2xf32>
    %c0_2 = arith.constant 0 : index
    %c0_3 = arith.constant 0 : index
    %c0_4 = arith.constant 0 : index
    %c0_5 = arith.constant 0 : index
    %3 = vector.load %arg1[%c0_2, %c0_3, %c0_4, %c0_5] : memref<9x1x2x256xf32, #tpu.memory_space<vmem>>, vector<1x1x2x256xf32>
    %4 = vector.shape_cast %3 : vector<1x1x2x256xf32> to vector<2x256xf32>
    %cst_6 = arith.constant dense<0.000000e+00> : vector<2x256xf32>
    %5 = tpu.matmul %2, %4, %cst_6 {dimension_numbers = #tpu.dot_dimension_numbers<[1], [0], [0], [1], [0, 0, 1, 1], [], []>} : vector<2x2xf32>, vector<2x256xf32>, vector<2x256xf32> -> vector<2x256xf32>
    %6 = arith.addf %0, %5 : vector<2x256xf32>
    %c1 = arith.constant 1 : index
    %c0_7 = arith.constant 0 : index
    %c0_8 = arith.constant 0 : index
    %7 = vector.load %arg2[%c1, %c0_7, %c0_8] : memref<9x2x2xf32, #tpu.memory_space<vmem>>, vector<1x2x2xf32>
    %8 = vector.shape_cast %7 : vector<1x2x2xf32> to vector<2x2xf32>
    %c1_9 = arith.constant 1 : index
    %c0_10 = arith.constant 0 : index
    %c0_11 = arith.constant 0 : index
    %c0_12 = arith.constant 0 : index
    %9 = vector.load %arg1[%c1_9, %c0_10, %c0_11, %c0_12] : memref<9x1x2x256xf32, #tpu.memory_space<vmem>>, vector<1x1x2x256xf32>
    %10 = vector.shape_cast %9 : vector<1x1x2x256xf32> to vector<2x256xf32>
    %cst_13 = arith.constant dense<0.000000e+00> : vector<2x256xf32>
    %11 = tpu.matmul %8, %10, %cst_13 {dimension_numbers = #tpu.dot_dimension_numbers<[1], [0], [0], [1], [0, 0, 1, 1], [], []>} : vector<2x2xf32>, vector<2x256xf32>, vector<2x256xf32> -> vector<2x256xf32>
    %12 = arith.addf %6, %11 : vector<2x256xf32>
    %c2 = arith.constant 2 : index
    %c0_14 = arith.constant 0 : index
    %c0_15 = arith.constant 0 : index
    %13 = vector.load %arg2[%c2, %c0_14, %c0_15] : memref<9x2x2xf32, #tpu.memory_space<vmem>>, vector<1x2x2xf32>
    %14 = vector.shape_cast %13 : vector<1x2x2xf32> to vector<2x2xf32>
    %c2_16 = arith.constant 2 : index
    %c0_17 = arith.constant 0 : index
    %c0_18 = arith.constant 0 : index
    %c0_19 = arith.constant 0 : index
    %15 = vector.load %arg1[%c2_16, %c0_17, %c0_18, %c0_19] : memref<9x1x2x256xf32, #tpu.memory_space<vmem>>, vector<1x1x2x256xf32>
    %16 = vector.shape_cast %15 : vector<1x1x2x256xf32> to vector<2x256xf32>
    %cst_20 = arith.constant dense<0.000000e+00> : vector<2x256xf32>
    %17 = tpu.matmul %14, %16, %cst_20 {dimension_numbers = #tpu.dot_dimension_numbers<[1], [0], [0], [1], [0, 0, 1, 1], [], []>} : vector<2x2xf32>, vector<2x256xf32>, vector<2x256xf32> -> vector<2x256xf32>
    %18 = arith.addf %12, %17 : vector<2x256xf32>
    %c3 = arith.constant 3 : index
    %c0_21 = arith.constant 0 : index
    %c0_22 = arith.constant 0 : index
    %19 = vector.load %arg2[%c3, %c0_21, %c0_22] : memref<9x2x2xf32, #tpu.memory_space<vmem>>, vector<1x2x2xf32>
    %20 = vector.shape_cast %19 : vector<1x2x2xf32> to vector<2x2xf32>
    %c3_23 = arith.constant 3 : index
    %c0_24 = arith.constant 0 : index
    %c0_25 = arith.constant 0 : index
    %c0_26 = arith.constant 0 : index
    %21 = vector.load %arg1[%c3_23, %c0_24, %c0_25, %c0_26] : memref<9x1x2x256xf32, #tpu.memory_space<vmem>>, vector<1x1x2x256xf32>
    %22 = vector.shape_cast %21 : vector<1x1x2x256xf32> to vector<2x256xf32>
    %cst_27 = arith.constant dense<0.000000e+00> : vector<2x256xf32>
    %23 = tpu.matmul %20, %22, %cst_27 {dimension_numbers = #tpu.dot_dimension_numbers<[1], [0], [0], [1], [0, 0, 1, 1], [], []>} : vector<2x2xf32>, vector<2x256xf32>, vector<2x256xf32> -> vector<2x256xf32>
    %24 = arith.addf %18, %23 : vector<2x256xf32>
    %c4 = arith.constant 4 : index
    %c0_28 = arith.constant 0 : index
    %c0_29 = arith.constant 0 : index
    %25 = vector.load %arg2[%c4, %c0_28, %c0_29] : memref<9x2x2xf32, #tpu.memory_space<vmem>>, vector<1x2x2xf32>
    %26 = vector.shape_cast %25 : vector<1x2x2xf32> to vector<2x2xf32>
    %c4_30 = arith.constant 4 : index
    %c0_31 = arith.constant 0 : index
    %c0_32 = arith.constant 0 : index
    %c0_33 = arith.constant 0 : index
    %27 = vector.load %arg1[%c4_30, %c0_31, %c0_32, %c0_33] : memref<9x1x2x256xf32, #tpu.memory_space<vmem>>, vector<1x1x2x256xf32>
    %28 = vector.shape_cast %27 : vector<1x1x2x256xf32> to vector<2x256xf32>
    %cst_34 = arith.constant dense<0.000000e+00> : vector<2x256xf32>
    %29 = tpu.matmul %26, %28, %cst_34 {dimension_numbers = #tpu.dot_dimension_numbers<[1], [0], [0], [1], [0, 0, 1, 1], [], []>} : vector<2x2xf32>, vector<2x256xf32>, vector<2x256xf32> -> vector<2x256xf32>
    %30 = arith.addf %24, %29 : vector<2x256xf32>
    %c5 = arith.constant 5 : index
    %c0_35 = arith.constant 0 : index
    %c0_36 = arith.constant 0 : index
    %31 = vector.load %arg2[%c5, %c0_35, %c0_36] : memref<9x2x2xf32, #tpu.memory_space<vmem>>, vector<1x2x2xf32>
    %32 = vector.shape_cast %31 : vector<1x2x2xf32> to vector<2x2xf32>
    %c5_37 = arith.constant 5 : index
    %c0_38 = arith.constant 0 : index
    %c0_39 = arith.constant 0 : index
    %c0_40 = arith.constant 0 : index
    %33 = vector.load %arg1[%c5_37, %c0_38, %c0_39, %c0_40] : memref<9x1x2x256xf32, #tpu.memory_space<vmem>>, vector<1x1x2x256xf32>
    %34 = vector.shape_cast %33 : vector<1x1x2x256xf32> to vector<2x256xf32>
    %cst_41 = arith.constant dense<0.000000e+00> : vector<2x256xf32>
    %35 = tpu.matmul %32, %34, %cst_41 {dimension_numbers = #tpu.dot_dimension_numbers<[1], [0], [0], [1], [0, 0, 1, 1], [], []>} : vector<2x2xf32>, vector<2x256xf32>, vector<2x256xf32> -> vector<2x256xf32>
    %36 = arith.addf %30, %35 : vector<2x256xf32>
    %c6 = arith.constant 6 : index
    %c0_42 = arith.constant 0 : index
    %c0_43 = arith.constant 0 : index
    %37 = vector.load %arg2[%c6, %c0_42, %c0_43] : memref<9x2x2xf32, #tpu.memory_space<vmem>>, vector<1x2x2xf32>
    %38 = vector.shape_cast %37 : vector<1x2x2xf32> to vector<2x2xf32>
    %c6_44 = arith.constant 6 : index
    %c0_45 = arith.constant 0 : index
    %c0_46 = arith.constant 0 : index
    %c0_47 = arith.constant 0 : index
    %39 = vector.load %arg1[%c6_44, %c0_45, %c0_46, %c0_47] : memref<9x1x2x256xf32, #tpu.memory_space<vmem>>, vector<1x1x2x256xf32>
    %40 = vector.shape_cast %39 : vector<1x1x2x256xf32> to vector<2x256xf32>
    %cst_48 = arith.constant dense<0.000000e+00> : vector<2x256xf32>
    %41 = tpu.matmul %38, %40, %cst_48 {dimension_numbers = #tpu.dot_dimension_numbers<[1], [0], [0], [1], [0, 0, 1, 1], [], []>} : vector<2x2xf32>, vector<2x256xf32>, vector<2x256xf32> -> vector<2x256xf32>
    %42 = arith.addf %36, %41 : vector<2x256xf32>
    %c7 = arith.constant 7 : index
    %c0_49 = arith.constant 0 : index
    %c0_50 = arith.constant 0 : index
    %43 = vector.load %arg2[%c7, %c0_49, %c0_50] : memref<9x2x2xf32, #tpu.memory_space<vmem>>, vector<1x2x2xf32>
    %44 = vector.shape_cast %43 : vector<1x2x2xf32> to vector<2x2xf32>
    %c7_51 = arith.constant 7 : index
    %c0_52 = arith.constant 0 : index
    %c0_53 = arith.constant 0 : index
    %c0_54 = arith.constant 0 : index
    %45 = vector.load %arg1[%c7_51, %c0_52, %c0_53, %c0_54] : memref<9x1x2x256xf32, #tpu.memory_space<vmem>>, vector<1x1x2x256xf32>
    %46 = vector.shape_cast %45 : vector<1x1x2x256xf32> to vector<2x256xf32>
    %cst_55 = arith.constant dense<0.000000e+00> : vector<2x256xf32>
    %47 = tpu.matmul %44, %46, %cst_55 {dimension_numbers = #tpu.dot_dimension_numbers<[1], [0], [0], [1], [0, 0, 1, 1], [], []>} : vector<2x2xf32>, vector<2x256xf32>, vector<2x256xf32> -> vector<2x256xf32>
    %48 = arith.addf %42, %47 : vector<2x256xf32>
    %c8 = arith.constant 8 : index
    %c0_56 = arith.constant 0 : index
    %c0_57 = arith.constant 0 : index
    %49 = vector.load %arg2[%c8, %c0_56, %c0_57] : memref<9x2x2xf32, #tpu.memory_space<vmem>>, vector<1x2x2xf32>
    %50 = vector.shape_cast %49 : vector<1x2x2xf32> to vector<2x2xf32>
    %c8_58 = arith.constant 8 : index
    %c0_59 = arith.constant 0 : index
    %c0_60 = arith.constant 0 : index
    %c0_61 = arith.constant 0 : index
    %51 = vector.load %arg1[%c8_58, %c0_59, %c0_60, %c0_61] : memref<9x1x2x256xf32, #tpu.memory_space<vmem>>, vector<1x1x2x256xf32>
    %52 = vector.shape_cast %51 : vector<1x1x2x256xf32> to vector<2x256xf32>
    %cst_62 = arith.constant dense<0.000000e+00> : vector<2x256xf32>
    %53 = tpu.matmul %50, %52, %cst_62 {dimension_numbers = #tpu.dot_dimension_numbers<[1], [0], [0], [1], [0, 0, 1, 1], [], []>} : vector<2x2xf32>, vector<2x256xf32>, vector<2x256xf32> -> vector<2x256xf32>
    %54 = arith.addf %48, %53 : vector<2x256xf32>
    %cst_63 = arith.constant 0.000000e+00 : f32
    %55 = vector.broadcast %cst_63 : f32 to vector<2x256xf32>
    %56 = arith.maximumf %54, %55 : vector<2x256xf32>
    %c0_64 = arith.constant 0 : index
    %c0_65 = arith.constant 0 : index
    %c0_66 = arith.constant 0 : index
    %57 = vector.load %arg3[%c0_64, %c0_65, %c0_66] : memref<1x2x256xf32, #tpu.memory_space<vmem>>, vector<1x2x256xf32>
    %58 = vector.shape_cast %57 : vector<1x2x256xf32> to vector<2x256xf32>
    %59 = vector.shape_cast %56 : vector<2x256xf32> to vector<1x2x256xf32>
    tpu.vector_store %arg3[%c0_64, %c0_65, %c0_66], %59 {strides = array<i32>} : memref<1x2x256xf32, #tpu.memory_space<vmem>>, vector<1x2x256xf32>,
    return
  }
  func.func @transform_0(%arg0: i32) -> (i32, i32, i32, i32) {
    %c0_i32 = arith.constant 0 : i32
    %c0_i32_0 = arith.constant 0 : i32
    %c0_i32_1 = arith.constant 0 : i32
    %c0_i32_2 = arith.constant 0 : i32
    return %c0_i32, %arg0, %c0_i32_0, %c0_i32_1 : i32, i32, i32, i32
  }
  func.func @transform_1(%arg0: i32) -> (i32, i32, i32) {
    %c0_i32 = arith.constant 0 : i32
    %c0_i32_0 = arith.constant 0 : i32
    %c0_i32_1 = arith.constant 0 : i32
    %c0_i32_2 = arith.constant 0 : i32
    return %c0_i32, %c0_i32_0, %c0_i32_1 : i32, i32, i32
  }
  func.func @transform_2(%arg0: i32) -> (i32, i32, i32) {
    %c0_i32 = arith.constant 0 : i32
    %c0_i32_0 = arith.constant 0 : i32
    %c0_i32_1 = arith.constant 0 : i32
    return %arg0, %c0_i32, %c0_i32_0 : i32, i32, i32
  }
}

module attributes {stable_mosaic.version = 11 : i64} {
  func.func @_matmul_act_kernel(%arg0: i32, %arg1: memref<1x8x256xf32, #tpu.memory_space<vmem>>, %arg2: memref<2x8xf32, #tpu.memory_space<vmem>>, %arg3: memref<1x2x256xf32, #tpu.memory_space<vmem>>) attributes {dimension_semantics = [#tpu.dimension_semantics<parallel>], iteration_bounds = array<i64: 2>, scalar_prefetch = 0 : i64, scratch_operands = 0 : i64, tpu.core_type = #tpu.core_type<tc>, window_params = [{transform_indices = @transform_0, window_bounds = array<i64: 1, 8, 256>}, {pipeline_mode = #tpu.pipeline_mode<synchronous>, transform_indices = @transform_1, window_bounds = array<i64: 2, 8>}, {transform_indices = @transform_2, window_bounds = array<i64: 1, 2, 256>}]} {
    %c0 = arith.constant 0 : index
    %c0_0 = arith.constant 0 : index
    %0 = vector.load %arg2[%c0, %c0_0] : memref<2x8xf32, #tpu.memory_space<vmem>>, vector<2x8xf32>
    %c0_1 = arith.constant 0 : index
    %c0_2 = arith.constant 0 : index
    %c0_3 = arith.constant 0 : index
    %1 = vector.load %arg1[%c0_1, %c0_2, %c0_3] : memref<1x8x256xf32, #tpu.memory_space<vmem>>, vector<1x8x256xf32>
    %2 = vector.shape_cast %1 : vector<1x8x256xf32> to vector<8x256xf32>
    %cst = arith.constant dense<0.000000e+00> : vector<2x256xf32>
    %3 = tpu.matmul %0, %2, %cst {dimension_numbers = #tpu.dot_dimension_numbers<[1], [0], [0], [1], [0, 0, 1, 1], [], []>} : vector<2x8xf32>, vector<8x256xf32>, vector<2x256xf32> -> vector<2x256xf32>
    %cst_4 = arith.constant 0.000000e+00 : f32
    %4 = vector.broadcast %cst_4 : f32 to vector<2x256xf32>
    %5 = arith.maximumf %3, %4 : vector<2x256xf32>
    %c0_5 = arith.constant 0 : index
    %c0_6 = arith.constant 0 : index
    %c0_7 = arith.constant 0 : index
    %6 = vector.load %arg3[%c0_5, %c0_6, %c0_7] : memref<1x2x256xf32, #tpu.memory_space<vmem>>, vector<1x2x256xf32>
    %7 = vector.shape_cast %6 : vector<1x2x256xf32> to vector<2x256xf32>
    %8 = vector.shape_cast %5 : vector<2x256xf32> to vector<1x2x256xf32>
    tpu.vector_store %arg3[%c0_5, %c0_6, %c0_7], %8 {strides = array<i32>} : memref<1x2x256xf32, #tpu.memory_space<vmem>>, vector<1x2x256xf32>,
    return
  }
  func.func @transform_0(%arg0: i32) -> (i32, i32, i32) {
    %c0_i32 = arith.constant 0 : i32
    %c0_i32_0 = arith.constant 0 : i32
    %c0_i32_1 = arith.constant 0 : i32
    return %arg0, %c0_i32, %c0_i32_0 : i32, i32, i32
  }
  func.func @transform_1(%arg0: i32) -> (i32, i32) {
    %c0_i32 = arith.constant 0 : i32
    %c0_i32_0 = arith.constant 0 : i32
    %c0_i32_1 = arith.constant 0 : i32
    return %c0_i32, %c0_i32_0 : i32, i32
  }
  func.func @transform_2(%arg0: i32) -> (i32, i32, i32) {
    %c0_i32 = arith.constant 0 : i32
    %c0_i32_0 = arith.constant 0 : i32
    %c0_i32_1 = arith.constant 0 : i32
    return %arg0, %c0_i32, %c0_i32_0 : i32, i32, i32
  }
}

module attributes {stable_mosaic.version = 11 : i64} {
  func.func @_matmul_bias_act_kernel(%arg0: i32, %arg1: memref<1x12x256xf32, #tpu.memory_space<vmem>>, %arg2: memref<4x12xf32, #tpu.memory_space<vmem>>, %arg3: memref<4x1xf32, #tpu.memory_space<vmem>>, %arg4: memref<1x4x256xf32, #tpu.memory_space<vmem>>) attributes {dimension_semantics = [#tpu.dimension_semantics<parallel>], iteration_bounds = array<i64: 2>, scalar_prefetch = 0 : i64, scratch_operands = 0 : i64, tpu.core_type = #tpu.core_type<tc>, window_params = [{transform_indices = @transform_0, window_bounds = array<i64: 1, 12, 256>}, {pipeline_mode = #tpu.pipeline_mode<synchronous>, transform_indices = @transform_1, window_bounds = array<i64: 4, 12>}, {pipeline_mode = #tpu.pipeline_mode<synchronous>, transform_indices = @transform_2, window_bounds = array<i64: 4, 1>}, {transform_indices = @transform_3, window_bounds = array<i64: 1, 4, 256>}]} {
    %c0 = arith.constant 0 : index
    %c0_0 = arith.constant 0 : index
    %0 = vector.load %arg2[%c0, %c0_0] : memref<4x12xf32, #tpu.memory_space<vmem>>, vector<4x12xf32>
    %c0_1 = arith.constant 0 : index
    %c0_2 = arith.constant 0 : index
    %c0_3 = arith.constant 0 : index
    %1 = vector.load %arg1[%c0_1, %c0_2, %c0_3] : memref<1x12x256xf32, #tpu.memory_space<vmem>>, vector<1x12x256xf32>
    %2 = vector.shape_cast %1 : vector<1x12x256xf32> to vector<12x256xf32>
    %cst = arith.constant dense<0.000000e+00> : vector<4x256xf32>
    %3 = tpu.matmul %0, %2, %cst {dimension_numbers = #tpu.dot_dimension_numbers<[1], [0], [0], [1], [0, 0, 1, 1], [], []>} : vector<4x12xf32>, vector<12x256xf32>, vector<4x256xf32> -> vector<4x256xf32>
    %c0_4 = arith.constant 0 : index
    %c0_5 = arith.constant 0 : index
    %4 = vector.load %arg3[%c0_4, %c0_5] : memref<4x1xf32, #tpu.memory_space<vmem>>, vector<4x1xf32>
    %5 = vector.broadcast %4 : vector<4x1xf32> to vector<4x256xf32>
    %6 = arith.addf %3, %5 : vector<4x256xf32>
    %c0_6 = arith.constant 0 : index
    %c0_7 = arith.constant 0 : index
    %c0_8 = arith.constant 0 : index
    %7 = vector.load %arg4[%c0_6, %c0_7, %c0_8] : memref<1x4x256xf32, #tpu.memory_space<vmem>>, vector<1x4x256xf32>
    %8 = vector.shape_cast %7 : vector<1x4x256xf32> to vector<4x256xf32>
    %9 = vector.shape_cast %6 : vector<4x256xf32> to vector<1x4x256xf32>
    tpu.vector_store %arg4[%c0_6, %c0_7, %c0_8], %9 {strides = array<i32>} : memref<1x4x256xf32, #tpu.memory_space<vmem>>, vector<1x4x256xf32>,
    return
  }
  func.func @transform_0(%arg0: i32) -> (i32, i32, i32) {
    %c0_i32 = arith.constant 0 : i32
    %c0_i32_0 = arith.constant 0 : i32
    %c0_i32_1 = arith.constant 0 : i32
    return %arg0, %c0_i32, %c0_i32_0 : i32, i32, i32
  }
  func.func @transform_1(%arg0: i32) -> (i32, i32) {
    %c0_i32 = arith.constant 0 : i32
    %c0_i32_0 = arith.constant 0 : i32
    %c0_i32_1 = arith.constant 0 : i32
    return %c0_i32, %c0_i32_0 : i32, i32
  }
  func.func @transform_2(%arg0: i32) -> (i32, i32) {
    %c0_i32 = arith.constant 0 : i32
    %c0_i32_0 = arith.constant 0 : i32
    %c0_i32_1 = arith.constant 0 : i32
    return %c0_i32, %c0_i32_0 : i32, i32
  }
  func.func @transform_3(%arg0: i32) -> (i32, i32, i32) {
    %c0_i32 = arith.constant 0 : i32
    %c0_i32_0 = arith.constant 0 : i32
    %c0_i32_1 = arith.constant 0 : i32
    return %arg0, %c0_i32, %c0_i32_0 : i32, i32, i32
  }
}

</mosaic_0001>

<llo_original>
// kernel: ghost_module1.5
$region0: #{ghost_module1.5}
  #allocation0 [shape = 'u32[]', space=smem, size = 0x4, offset = 0x4, fixed_abs, tag = 'smem constant byte address 0x4 - core index']
  #allocation1 [shape = 'u32[144,128]{1,0:T(1,128)}', space=vmem, size = 0x12000, scoped, tag = 'internal scratch']
  %s0 = inlined_call_operand.vmem [shape: f32[2,4,256], index: 0, kind: input, shape index: {}]
  %s1 = inlined_call_operand.vmem [shape: f32[2,4], index: 1, kind: input, shape index: {}]
  %s2 = inlined_call_operand.vmem [shape: f32[2,2,256], index: 2, kind: output, shape index: {}]
  %s3 = sld [smem:[#allocation0]]
  $region41: #{ghost_module1.5} parent=0
    _
  %s5 = ssub.s32 1, %s3
  %s6 = scalar_select 0, %s5, %s3
  loop: start=0, step=1, limit=4
  $region2: #{ghost_module1.5} parent=0 // loop_pre_header
    _
  $region3: #{ghost_module1.5} parent=0 // loop_header
    %s8 = sphi 0, %s12
    %p9 = scmp.ge.s32.totalorder %s8, 4
    %s18 = sphi 0, %s20
    %s21 = sphi 0, %s18
    %s22 = sphi 0, %s21
    %s38 = sphi 0, %s22
    %s42 = sphi 0, %s42
    %s44 = sphi 0, %s42
    %s45 = sphi 0, %s44
    %s59 = sphi 0, %s45
    %s65 = sphi 0, %s67
    %s68 = sphi 0, %s65
    %s69 = sphi 0, %s68
    %s85 = sphi 0, %s69
  $region4: #{ghost_module1.5} parent=0 // loop_header_branch
    %11 = sbr.rel (%p9) target = $region8
  $region5: #{ghost_module1.5} parent=0 // loop_body
    %s13 = ssub.s32 %s8, 1
    %s14 = ssub.s32 %s8, 2
    %s15 = sadd.s32 %s8, 1
    %s16 = ssub.s32 %s8, %s15
    %p17 = scmp.eq.s32.totalorder %s16, 0
    %s19 = sadd.s32 %s18, 1
    %s20 = scalar_select %p17, %s18, %s19
    %p23 = pneg %p17
    %p24 = scmp.eq.s32.totalorder %s8, 1
    %p25 = por %p23, %p24
    %p26 = scmp.ne.s32.totalorder %s18, %s21
    %p27 = scmp.eq.s32.totalorder %s8, 0
    %p28 = por %p26, %p27
    %p29 = scmp.ne.s32.totalorder %s18, %s21
    %p30 = scmp.eq.s32.totalorder %s13, 1
    %p31 = por %p29, %p30
    %p32 = scmp.ne.s32.totalorder %s21, %s22
    %p33 = scmp.eq.s32.totalorder %s13, 0
    %p34 = por %p32, %p33
    %p35 = scmp.ne.s32.totalorder %s21, %s22
    %p36 = scmp.eq.s32.totalorder %s14, 1
    %p37 = por %p35, %p36
    %p39 = scmp.ne.s32.totalorder %s22, %s38
    %p40 = scmp.eq.s32.totalorder %s14, 0
    %p41 = por %p39, %p40
    %s43 = sadd.s32 %s42, 1
    %p46 = scmp.eq.s32.totalorder %s8, 1
    %p47 = scmp.ne.s32.totalorder %s42, %s44
    %p48 = scmp.eq.s32.totalorder %s8, 0
    %p49 = por %p47, %p48
    %p50 = scmp.ne.s32.totalorder %s42, %s44
    %p51 = scmp.eq.s32.totalorder %s13, 1
    %p52 = por %p50, %p51
    %p53 = scmp.ne.s32.totalorder %s44, %s45
    %p54 = scmp.eq.s32.totalorder %s13, 0
    %p55 = por %p53, %p54
    %p56 = scmp.ne.s32.totalorder %s44, %s45
    %p57 = scmp.eq.s32.totalorder %s14, 1
    %p58 = por %p56, %p57
    %p60 = scmp.ne.s32.totalorder %s45, %s59
    %p61 = scmp.eq.s32.totalorder %s14, 0
    %p62 = por %p60, %p61
    %s63 = ssub.s32 %s8, %s15
    %p64 = scmp.eq.s32.totalorder %s63, 0
    %s66 = sadd.s32 %s65, 1
    %s67 = scalar_select %p64, %s65, %s66
    %p70 = pneg %p64
    %p71 = scmp.eq.s32.totalorder %s8, 1
    %p72 = por %p70, %p71
    %p73 = scmp.ne.s32.totalorder %s65, %s68
    %p74 = scmp.eq.s32.totalorder %s8, 0
    %p75 = por %p73, %p74
    %p76 = scmp.ne.s32.totalorder %s65, %s68
    %p77 = scmp.eq.s32.totalorder %s13, 1
    %p78 = por %p76, %p77
    %p79 = scmp.ne.s32.totalorder %s68, %s69
    %p80 = scmp.eq.s32.totalorder %s13, 0
    %p81 = por %p79, %p80
    %p82 = scmp.ne.s32.totalorder %s68, %s69
    %p83 = scmp.eq.s32.totalorder %s14, 1
    %p84 = por %p82, %p83
    %p86 = scmp.ne.s32.totalorder %s69, %s85
    %p87 = scmp.eq.s32.totalorder %s14, 0
    %p88 = por %p86, %p87
    %p89 = scmp.le.s32.totalorder 1, %s8
    %p90 = scmp.lt.s32.totalorder %s8, 3
    %p91 = pnand %p89, %p90
    %p92 = pneg %p91
    // Predicated region
    $region9: #{ghost_module1.5} parent=5 // pred_check
      _
    $region10: #{ghost_module1.5} parent=5 // pred_check_branch
      %94 = sbr.rel (%p91) target = $region12
    $region11: #{ghost_module1.5} parent=5 // pred_region
      %s95 = ssub.s32 %s8, 1
      // Predicated region
      $region13: #{ghost_module1.5} parent=11 // pred_check
        %p96 = pneg %p55
      $region14: #{ghost_module1.5} parent=11 // pred_check_branch
        %98 = sbr.rel (%p96) target = $region16
      $region15: #{ghost_module1.5} parent=11 // pred_region
        _
      $region16: #{ghost_module1.5} parent=11 // pred_fallthru
        _
    $region12: #{ghost_module1.5} parent=5 // pred_fallthru
      _
    %p99 = scmp.lt.s32.totalorder %s8, 2
    // Predicated region
    $region17: #{ghost_module1.5} parent=5 // pred_check
      %p100 = pneg %p99
    $region18: #{ghost_module1.5} parent=5 // pred_check_branch
      %102 = sbr.rel (%p100) target = $region20
    $region19: #{ghost_module1.5} parent=5 // pred_region
      // Predicated region
      $region21: #{ghost_module1.5} parent=19 // pred_check
        %p103 = pneg %p28
      $region22: #{ghost_module1.5} parent=19 // pred_check_branch
        %105 = sbr.rel (%p103) target = $region24
      $region23: #{ghost_module1.5} parent=19 // pred_region
        %p106 = scmp.lt.s32.totalorder %s8, 1
        %s107 = scalar_select %p106, %s8, 1
        %s108 = smul.addr %s107, 2
        %s109 = smul.addr %s108, 4
        %s110 = scalar_lea.vmem %s0, %s109
      $region24: #{ghost_module1.5} parent=19 // pred_fallthru
        _
    $region20: #{ghost_module1.5} parent=5 // pred_fallthru
      _
    %p111 = scmp.le.s32.totalorder 1, %s8
    %p112 = scmp.lt.s32.totalorder %s8, 3
    %p113 = pnand %p111, %p112
    %p114 = pneg %p113
    // Predicated region
    $region25: #{ghost_module1.5} parent=5 // pred_check
      _
    $region26: #{ghost_module1.5} parent=5 // pred_check_branch
      %116 = sbr.rel (%p113) target = $region28
    $region27: #{ghost_module1.5} parent=5 // pred_region
      %s117 = ssub.s32 %s8, 1
      %p118 = scmp.lt.s32.totalorder %s13, 1
      %s119 = scalar_select %p118, %s13, 1
      %s120 = smul.addr %s119, 2
      %s121 = smul.addr %s120, 4
      %s122 = scalar_lea.vmem %s0, %s121
      %p123 = pneg %p34
      %p124 = pneg %p31
      %p125 = pneg %p55
      %p126 = pneg %p52
      %p127 = pneg %p81
      %p128 = pneg %p78
      %p129 = scmp.lt.s32.totalorder %s13, 1
      %s130 = scalar_select %p129, %s13, 1
      %s131 = smul.addr %s130, 2
      %s132 = smul.addr %s131, 2
      %s133 = scalar_lea.vmem %s2, %s132
      %p134 = scmp.lt.s32.totalorder %s13, 1
      %s135 = scalar_select %p134, %s13, 1
      %s136 = smul.addr %s135, 2
      %s137 = smul.addr %s136, 4
      %s138 = scalar_lea.vmem %s0, %s137
      %p139 = scmp.lt.s32.totalorder %s13, 1
      %s140 = scalar_select %p139, %s13, 1
      %s141 = smul.addr %s140, 2
      %s142 = smul.addr %s141, 2
      %s143 = scalar_lea.vmem %s2, %s142
      %v144 = vld [vmem:[%s1] sm:$0x3]
      %v145 = vld [vmem:[%s138] sm:$0xff]
      %v147 = vcombine.high %v145, %v145
      %vm148 = vcmask 31744
      %v150 = vsel %vm148, %v144, 0
      %vm152 = vcmask 1043456
      %v153 = vsel %vm152, %v145, 0
      %v155 = vsel %vm152, %v147, 0
      %157 = vmatprep.subr.mxu0 %v155
      %158 = vmatpush1.msra.mxu0 %v153
      %159 = vmatprep.subr.mxu0 0.0
      %160 = vmatpush1.msra.mxu0 0.0
      %161 = vmatprep.subr.mxu0 0.0
      %162 = vmatpush1.msra.mxu0 0.0
      %163 = vmatprep.subr.mxu0 0.0
      %164 = vmatpush1.msra.mxu0 0.0
      %165 = vmatprep.subr.mxu0 0.0
      %166 = vmatpush1.msra.mxu0 0.0
      %167 = vmatprep.subr.mxu0 0.0
      %168 = vmatpush1.msra.mxu0 0.0
      %169 = vmatprep.subr.mxu0 0.0
      %170 = vmatpush1.msra.mxu0 0.0
      %171 = vmatprep.subr.mxu0 0.0
      %172 = vmatpush1.msra.mxu0 0.0
      %173 = vmatprep.subr.mxu0 0.0
      %174 = vmatpush1.msra.mxu0 0.0
      %175 = vmatprep.subr.mxu0 0.0
      %176 = vmatpush1.msra.mxu0 0.0
      %177 = vmatprep.subr.mxu0 0.0
      %178 = vmatpush1.msra.mxu0 0.0
      %179 = vmatprep.subr.mxu0 0.0
      %180 = vmatpush1.msra.mxu0 0.0
      %181 = vmatprep.subr.mxu0 0.0
      %182 = vmatpush1.msra.mxu0 0.0
      %183 = vmatprep.subr.mxu0 0.0
      %184 = vmatpush1.msra.mxu0 0.0
      %185 = vmatprep.subr.mxu0 0.0
      %186 = vmatpush1.msra.mxu0 0.0
      %187 = vmatprep.subr.mxu0 0.0
      %188 = vmatpush1.msra.mxu0 0.0
      %189 = vmatprep.subr.mxu0 0.0
      %190 = vmatpush1.msra.mxu0 0.0
      %191 = vmatprep.subr.mxu0 0.0
      %192 = vmatpush1.msra.mxu0 0.0
      %193 = vmatprep.subr.mxu0 0.0
      %194 = vmatpush1.msra.mxu0 0.0
      %195 = vmatprep.subr.mxu0 0.0
      %196 = vmatpush1.msra.mxu0 0.0
      %197 = vmatprep.subr.mxu0 0.0
      %198 = vmatpush1.msra.mxu0 0.0
      %199 = vmatprep.subr.mxu0 0.0
      %200 = vmatpush1.msra.mxu0 0.0
      %201 = vmatprep.subr.mxu0 0.0
      %202 = vmatpush1.msra.mxu0 0.0
      %203 = vmatprep.subr.mxu0 0.0
      %204 = vmatpush1.msra.mxu0 0.0
      %205 = vmatprep.subr.mxu0 0.0
      %206 = vmatpush1.msra.mxu0 0.0
      %207 = vmatprep.subr.mxu0 0.0
      %208 = vmatpush1.msra.mxu0 0.0
      %209 = vmatprep.subr.mxu0 0.0
      %210 = vmatpush1.msra.mxu0 0.0
      %211 = vmatprep.subr.mxu0 0.0
      %212 = vmatpush1.msra.mxu0 0.0
      %213 = vmatprep.subr.mxu0 0.0
      %214 = vmatpush1.msra.mxu0 0.0
      %215 = vmatprep.subr.mxu0 0.0
      %216 = vmatpush1.msra.mxu0 0.0
      %217 = vmatprep.subr.mxu0 0.0
      %218 = vmatpush1.msra.mxu0 0.0
      %219 = vmatprep.subr.mxu0 0.0
      %220 = vmatpush1.msra.mxu0 0.0
      %221 = vmatprep.mubr.f32.mxu0 0.0
      %222 = vmatmul.mubr.f32.gmra.mrb[0].mxu0 %v150
      %v223 = vpop.f32.mrb[0].mxu0
      %v224 = vadd.f32 0.0, %v223
      %v225 = vpop.f32.mrb[0].mxu0
      %v226 = vadd.f32 0.0, %v225
      %227 = vdwg.mxu0
      %v228 = vmax.f32 %v224, 0.0
      %v229 = vmax.f32 %v226, 0.0
      %v232 = vcombine.low %v228, %v229
      %v234 = vunpack.c.l.s4 1983009808
      %v235 = vunpack.c.0.s8 %v234
      %v236 = vlaneseq
      %v237 = vshrl.u32 %v236, 7
      %v238 = vsub.s32 %v235, %v237
      %v239 = vrot.slane %v232, %v238
      %241 = vst [vmem:[%s143] sm:$0xf] %v239
      %p242 = scmp.lt.s32.totalorder %s13, 1
      %s243 = scalar_select %p242, %s13, 1
      %s244 = smul.addr %s243, 2
      %s245 = smul.addr %s244, 2
      %s246 = scalar_lea.vmem %s2, %s245
      // Predicated region
      $region29: #{ghost_module1.5} parent=27 // pred_check
        %p247 = pneg %p78
      $region30: #{ghost_module1.5} parent=27 // pred_check_branch
        %249 = sbr.rel (%p247) target = $region32
      $region31: #{ghost_module1.5} parent=27 // pred_region
        _
      $region32: #{ghost_module1.5} parent=27 // pred_fallthru
        _
    $region28: #{ghost_module1.5} parent=5 // pred_fallthru
      _
    %p250 = scmp.le.s32.totalorder 2, %s8
    // Predicated region
    $region33: #{ghost_module1.5} parent=5 // pred_check
      %p251 = pneg %p250
    $region34: #{ghost_module1.5} parent=5 // pred_check_branch
      %253 = sbr.rel (%p251) target = $region36
    $region35: #{ghost_module1.5} parent=5 // pred_region
      %s254 = ssub.s32 %s8, 2
      // Predicated region
      $region37: #{ghost_module1.5} parent=35 // pred_check
        %p255 = pneg %p84
      $region38: #{ghost_module1.5} parent=35 // pred_check_branch
        %257 = sbr.rel (%p255) target = $region40
      $region39: #{ghost_module1.5} parent=35 // pred_region
        %p258 = scmp.lt.s32.totalorder %s14, 1
        %s259 = scalar_select %p258, %s14, 1
        %s260 = smul.addr %s259, 2
        %s261 = smul.addr %s260, 2
        %s262 = scalar_lea.vmem %s2, %s261
      $region40: #{ghost_module1.5} parent=35 // pred_fallthru
        _
    $region36: #{ghost_module1.5} parent=5 // pred_fallthru
      _
  $region6: #{ghost_module1.5} parent=0 // loop_footer
    %s12 = sadd.s32 1, %s8
  $region7: #{ghost_module1.5} parent=0 // loop_footer_branch
    %7 = sbr.rel target = $region3
  $region8: #{ghost_module1.5} parent=0 // loop_exit
    _

// kernel: ghost_module1.7
$region0: #{ghost_module1.7}
  #allocation0 [shape = 'u32[]', space=smem, size = 0x4, offset = 0x4, fixed_abs, tag = 'smem constant byte address 0x4 - core index']
  #allocation1 [shape = 'u32[144,128]{1,0:T(1,128)}', space=vmem, size = 0x12000, scoped, tag = 'internal scratch']
  %s0 = inlined_call_operand.vmem [shape: f32[2,8,256], index: 0, kind: input, shape index: {}]
  %s1 = inlined_call_operand.vmem [shape: f32[2,8], index: 1, kind: input, shape index: {}]
  %s2 = inlined_call_operand.vmem [shape: f32[2,2,256], index: 2, kind: output, shape index: {}]
  %s3 = sld [smem:[#allocation0]]
  $region41: #{ghost_module1.7} parent=0
    _
  %s5 = ssub.s32 1, %s3
  %s6 = scalar_select 0, %s5, %s3
  loop: start=0, step=1, limit=4
  $region2: #{ghost_module1.7} parent=0 // loop_pre_header
    _
  $region3: #{ghost_module1.7} parent=0 // loop_header
    %s8 = sphi 0, %s12
    %p9 = scmp.ge.s32.totalorder %s8, 4
    %s18 = sphi 0, %s20
    %s21 = sphi 0, %s18
    %s22 = sphi 0, %s21
    %s38 = sphi 0, %s22
    %s42 = sphi 0, %s42
    %s44 = sphi 0, %s42
    %s45 = sphi 0, %s44
    %s59 = sphi 0, %s45
    %s65 = sphi 0, %s67
    %s68 = sphi 0, %s65
    %s69 = sphi 0, %s68
    %s85 = sphi 0, %s69
  $region4: #{ghost_module1.7} parent=0 // loop_header_branch
    %11 = sbr.rel (%p9) target = $region8
  $region5: #{ghost_module1.7} parent=0 // loop_body
    %s13 = ssub.s32 %s8, 1
    %s14 = ssub.s32 %s8, 2
    %s15 = sadd.s32 %s8, 1
    %s16 = ssub.s32 %s8, %s15
    %p17 = scmp.eq.s32.totalorder %s16, 0
    %s19 = sadd.s32 %s18, 1
    %s20 = scalar_select %p17, %s18, %s19
    %p23 = pneg %p17
    %p24 = scmp.eq.s32.totalorder %s8, 1
    %p25 = por %p23, %p24
    %p26 = scmp.ne.s32.totalorder %s18, %s21
    %p27 = scmp.eq.s32.totalorder %s8, 0
    %p28 = por %p26, %p27
    %p29 = scmp.ne.s32.totalorder %s18, %s21
    %p30 = scmp.eq.s32.totalorder %s13, 1
    %p31 = por %p29, %p30
    %p32 = scmp.ne.s32.totalorder %s21, %s22
    %p33 = scmp.eq.s32.totalorder %s13, 0
    %p34 = por %p32, %p33
    %p35 = scmp.ne.s32.totalorder %s21, %s22
    %p36 = scmp.eq.s32.totalorder %s14, 1
    %p37 = por %p35, %p36
    %p39 = scmp.ne.s32.totalorder %s22, %s38
    %p40 = scmp.eq.s32.totalorder %s14, 0
    %p41 = por %p39, %p40
    %s43 = sadd.s32 %s42, 1
    %p46 = scmp.eq.s32.totalorder %s8, 1
    %p47 = scmp.ne.s32.totalorder %s42, %s44
    %p48 = scmp.eq.s32.totalorder %s8, 0
    %p49 = por %p47, %p48
    %p50 = scmp.ne.s32.totalorder %s42, %s44
    %p51 = scmp.eq.s32.totalorder %s13, 1
    %p52 = por %p50, %p51
    %p53 = scmp.ne.s32.totalorder %s44, %s45
    %p54 = scmp.eq.s32.totalorder %s13, 0
    %p55 = por %p53, %p54
    %p56 = scmp.ne.s32.totalorder %s44, %s45
    %p57 = scmp.eq.s32.totalorder %s14, 1
    %p58 = por %p56, %p57
    %p60 = scmp.ne.s32.totalorder %s45, %s59
    %p61 = scmp.eq.s32.totalorder %s14, 0
    %p62 = por %p60, %p61
    %s63 = ssub.s32 %s8, %s15
    %p64 = scmp.eq.s32.totalorder %s63, 0
    %s66 = sadd.s32 %s65, 1
    %s67 = scalar_select %p64, %s65, %s66
    %p70 = pneg %p64
    %p71 = scmp.eq.s32.totalorder %s8, 1
    %p72 = por %p70, %p71
    %p73 = scmp.ne.s32.totalorder %s65, %s68
    %p74 = scmp.eq.s32.totalorder %s8, 0
    %p75 = por %p73, %p74
    %p76 = scmp.ne.s32.totalorder %s65, %s68
    %p77 = scmp.eq.s32.totalorder %s13, 1
    %p78 = por %p76, %p77
    %p79 = scmp.ne.s32.totalorder %s68, %s69
    %p80 = scmp.eq.s32.totalorder %s13, 0
    %p81 = por %p79, %p80
    %p82 = scmp.ne.s32.totalorder %s68, %s69
    %p83 = scmp.eq.s32.totalorder %s14, 1
    %p84 = por %p82, %p83
    %p86 = scmp.ne.s32.totalorder %s69, %s85
    %p87 = scmp.eq.s32.totalorder %s14, 0
    %p88 = por %p86, %p87
    %p89 = scmp.le.s32.totalorder 1, %s8
    %p90 = scmp.lt.s32.totalorder %s8, 3
    %p91 = pnand %p89, %p90
    %p92 = pneg %p91
    // Predicated region
    $region9: #{ghost_module1.7} parent=5 // pred_check
      _
    $region10: #{ghost_module1.7} parent=5 // pred_check_branch
      %94 = sbr.rel (%p91) target = $region12
    $region11: #{ghost_module1.7} parent=5 // pred_region
      %s95 = ssub.s32 %s8, 1
      // Predicated region
      $region13: #{ghost_module1.7} parent=11 // pred_check
        %p96 = pneg %p55
      $region14: #{ghost_module1.7} parent=11 // pred_check_branch
        %98 = sbr.rel (%p96) target = $region16
      $region15: #{ghost_module1.7} parent=11 // pred_region
        _
      $region16: #{ghost_module1.7} parent=11 // pred_fallthru
        _
    $region12: #{ghost_module1.7} parent=5 // pred_fallthru
      _
    %p99 = scmp.lt.s32.totalorder %s8, 2
    // Predicated region
    $region17: #{ghost_module1.7} parent=5 // pred_check
      %p100 = pneg %p99
    $region18: #{ghost_module1.7} parent=5 // pred_check_branch
      %102 = sbr.rel (%p100) target = $region20
    $region19: #{ghost_module1.7} parent=5 // pred_region
      // Predicated region
      $region21: #{ghost_module1.7} parent=19 // pred_check
        %p103 = pneg %p28
      $region22: #{ghost_module1.7} parent=19 // pred_check_branch
        %105 = sbr.rel (%p103) target = $region24
      $region23: #{ghost_module1.7} parent=19 // pred_region
        %p106 = scmp.lt.s32.totalorder %s8, 1
        %s107 = scalar_select %p106, %s8, 1
        %s108 = smul.addr %s107, 2
        %s109 = smul.addr %s108, 8
        %s110 = scalar_lea.vmem %s0, %s109
      $region24: #{ghost_module1.7} parent=19 // pred_fallthru
        _
    $region20: #{ghost_module1.7} parent=5 // pred_fallthru
      _
    %p111 = scmp.le.s32.totalorder 1, %s8
    %p112 = scmp.lt.s32.totalorder %s8, 3
    %p113 = pnand %p111, %p112
    %p114 = pneg %p113
    // Predicated region
    $region25: #{ghost_module1.7} parent=5 // pred_check
      _
    $region26: #{ghost_module1.7} parent=5 // pred_check_branch
      %116 = sbr.rel (%p113) target = $region28
    $region27: #{ghost_module1.7} parent=5 // pred_region
      %s117 = ssub.s32 %s8, 1
      %p118 = scmp.lt.s32.totalorder %s13, 1
      %s119 = scalar_select %p118, %s13, 1
      %s120 = smul.addr %s119, 2
      %s121 = smul.addr %s120, 8
      %s122 = scalar_lea.vmem %s0, %s121
      %p123 = pneg %p34
      %p124 = pneg %p31
      %p125 = pneg %p55
      %p126 = pneg %p52
      %p127 = pneg %p81
      %p128 = pneg %p78
      %p129 = scmp.lt.s32.totalorder %s13, 1
      %s130 = scalar_select %p129, %s13, 1
      %s131 = smul.addr %s130, 2
      %s132 = smul.addr %s131, 2
      %s133 = scalar_lea.vmem %s2, %s132
      %p134 = scmp.lt.s32.totalorder %s13, 1
      %s135 = scalar_select %p134, %s13, 1
      %s136 = smul.addr %s135, 2
      %s137 = smul.addr %s136, 8
      %s138 = scalar_lea.vmem %s0, %s137
      %p139 = scmp.lt.s32.totalorder %s13, 1
      %s140 = scalar_select %p139, %s13, 1
      %s141 = smul.addr %s140, 2
      %s142 = smul.addr %s141, 2
      %s143 = scalar_lea.vmem %s2, %s142
      %v144 = vld [vmem:[%s1] sm:$0x3]
      %v145 = vld [vmem:[%s138] sm:$0xff]
      %v146 = vld [vmem:[%s138 + $0x8] sm:$0xff]
      %vm147 = vcmask 64512
      %v149 = vsel %vm147, %v144, 0
      %151 = vmatprep.subr.mxu0 %v146
      %152 = vmatpush1.msra.mxu0 %v145
      %153 = vmatprep.subr.mxu0 0.0
      %154 = vmatpush1.msra.mxu0 0.0
      %155 = vmatprep.subr.mxu0 0.0
      %156 = vmatpush1.msra.mxu0 0.0
      %157 = vmatprep.subr.mxu0 0.0
      %158 = vmatpush1.msra.mxu0 0.0
      %159 = vmatprep.subr.mxu0 0.0
      %160 = vmatpush1.msra.mxu0 0.0
      %161 = vmatprep.subr.mxu0 0.0
      %162 = vmatpush1.msra.mxu0 0.0
      %163 = vmatprep.subr.mxu0 0.0
      %164 = vmatpush1.msra.mxu0 0.0
      %165 = vmatprep.subr.mxu0 0.0
      %166 = vmatpush1.msra.mxu0 0.0
      %167 = vmatprep.subr.mxu0 0.0
      %168 = vmatpush1.msra.mxu0 0.0
      %169 = vmatprep.subr.mxu0 0.0
      %170 = vmatpush1.msra.mxu0 0.0
      %171 = vmatprep.subr.mxu0 0.0
      %172 = vmatpush1.msra.mxu0 0.0
      %173 = vmatprep.subr.mxu0 0.0
      %174 = vmatpush1.msra.mxu0 0.0
      %175 = vmatprep.subr.mxu0 0.0
      %176 = vmatpush1.msra.mxu0 0.0
      %177 = vmatprep.subr.mxu0 0.0
      %178 = vmatpush1.msra.mxu0 0.0
      %179 = vmatprep.subr.mxu0 0.0
      %180 = vmatpush1.msra.mxu0 0.0
      %181 = vmatprep.subr.mxu0 0.0
      %182 = vmatpush1.msra.mxu0 0.0
      %183 = vmatprep.subr.mxu0 0.0
      %184 = vmatpush1.msra.mxu0 0.0
      %185 = vmatprep.subr.mxu0 0.0
      %186 = vmatpush1.msra.mxu0 0.0
      %187 = vmatprep.subr.mxu0 0.0
      %188 = vmatpush1.msra.mxu0 0.0
      %189 = vmatprep.subr.mxu0 0.0
      %190 = vmatpush1.msra.mxu0 0.0
      %191 = vmatprep.subr.mxu0 0.0
      %192 = vmatpush1.msra.mxu0 0.0
      %193 = vmatprep.subr.mxu0 0.0
      %194 = vmatpush1.msra.mxu0 0.0
      %195 = vmatprep.subr.mxu0 0.0
      %196 = vmatpush1.msra.mxu0 0.0
      %197 = vmatprep.subr.mxu0 0.0
      %198 = vmatpush1.msra.mxu0 0.0
      %199 = vmatprep.subr.mxu0 0.0
      %200 = vmatpush1.msra.mxu0 0.0
      %201 = vmatprep.subr.mxu0 0.0
      %202 = vmatpush1.msra.mxu0 0.0
      %203 = vmatprep.subr.mxu0 0.0
      %204 = vmatpush1.msra.mxu0 0.0
      %205 = vmatprep.subr.mxu0 0.0
      %206 = vmatpush1.msra.mxu0 0.0
      %207 = vmatprep.subr.mxu0 0.0
      %208 = vmatpush1.msra.mxu0 0.0
      %209 = vmatprep.subr.mxu0 0.0
      %210 = vmatpush1.msra.mxu0 0.0
      %211 = vmatprep.subr.mxu0 0.0
      %212 = vmatpush1.msra.mxu0 0.0
      %213 = vmatprep.subr.mxu0 0.0
      %214 = vmatpush1.msra.mxu0 0.0
      %215 = vmatprep.mubr.f32.mxu0 0.0
      %216 = vmatmul.mubr.f32.gmra.mrb[0].mxu0 %v149
      %v217 = vpop.f32.mrb[0].mxu0
      %v218 = vadd.f32 0.0, %v217
      %v219 = vpop.f32.mrb[0].mxu0
      %v220 = vadd.f32 0.0, %v219
      %221 = vdwg.mxu0
      %v222 = vmax.f32 %v218, 0.0
      %v223 = vmax.f32 %v220, 0.0
      %v226 = vcombine.low %v222, %v223
      %v228 = vunpack.c.l.s4 1983009808
      %v229 = vunpack.c.0.s8 %v228
      %v230 = vlaneseq
      %v231 = vshrl.u32 %v230, 7
      %v232 = vsub.s32 %v229, %v231
      %v233 = vrot.slane %v226, %v232
      %235 = vst [vmem:[%s143] sm:$0xf] %v233
      %p236 = scmp.lt.s32.totalorder %s13, 1
      %s237 = scalar_select %p236, %s13, 1
      %s238 = smul.addr %s237, 2
      %s239 = smul.addr %s238, 2
      %s240 = scalar_lea.vmem %s2, %s239
      // Predicated region
      $region29: #{ghost_module1.7} parent=27 // pred_check
        %p241 = pneg %p78
      $region30: #{ghost_module1.7} parent=27 // pred_check_branch
        %243 = sbr.rel (%p241) target = $region32
      $region31: #{ghost_module1.7} parent=27 // pred_region
        _
      $region32: #{ghost_module1.7} parent=27 // pred_fallthru
        _
    $region28: #{ghost_module1.7} parent=5 // pred_fallthru
      _
    %p244 = scmp.le.s32.totalorder 2, %s8
    // Predicated region
    $region33: #{ghost_module1.7} parent=5 // pred_check
      %p245 = pneg %p244
    $region34: #{ghost_module1.7} parent=5 // pred_check_branch
      %247 = sbr.rel (%p245) target = $region36
    $region35: #{ghost_module1.7} parent=5 // pred_region
      %s248 = ssub.s32 %s8, 2
      // Predicated region
      $region37: #{ghost_module1.7} parent=35 // pred_check
        %p249 = pneg %p84
      $region38: #{ghost_module1.7} parent=35 // pred_check_branch
        %251 = sbr.rel (%p249) target = $region40
      $region39: #{ghost_module1.7} parent=35 // pred_region
        %p252 = scmp.lt.s32.totalorder %s14, 1
        %s253 = scalar_select %p252, %s14, 1
        %s254 = smul.addr %s253, 2
        %s255 = smul.addr %s254, 2
        %s256 = scalar_lea.vmem %s2, %s255
      $region40: #{ghost_module1.7} parent=35 // pred_fallthru
        _
    $region36: #{ghost_module1.7} parent=5 // pred_fallthru
      _
  $region6: #{ghost_module1.7} parent=0 // loop_footer
    %s12 = sadd.s32 1, %s8
  $region7: #{ghost_module1.7} parent=0 // loop_footer_branch
    %7 = sbr.rel target = $region3
  $region8: #{ghost_module1.7} parent=0 // loop_exit
    _

// kernel: ghost_module1.6
$region0: #{ghost_module1.6}
  #allocation0 [shape = 'u32[]', space=smem, size = 0x4, offset = 0x4, fixed_abs, tag = 'smem constant byte address 0x4 - core index']
  #allocation1 [shape = 'u32[144,128]{1,0:T(1,128)}', space=vmem, size = 0x12000, scoped, tag = 'internal scratch']
  %s0 = inlined_call_operand.vmem [shape: f32[9,2,2,256], index: 0, kind: input, shape index: {}]
  %s1 = inlined_call_operand.vmem [shape: f32[9,2,2], index: 1, kind: input, shape index: {}]
  %s2 = inlined_call_operand.vmem [shape: f32[2,2,256], index: 2, kind: output, shape index: {}]
  %s3 = sld [smem:[#allocation0]]
  $region82: #{ghost_module1.6} parent=0
    _
  %s5 = ssub.s32 1, %s3
  %s6 = scalar_select 0, %s5, %s3
  $region1: #{ghost_module1.6} parent=0
    #allocation2 [shape = 'u8[36864]{0}', space=vmem, size = 0x9000, scoped, tag = 'input window, operand 0']
    loop: start=0, step=1, limit=4
    $region2: #{ghost_module1.6} parent=1 // loop_pre_header
      _
    $region3: #{ghost_module1.6} parent=1 // loop_header
      %s8 = sphi 0, %s12
      %p9 = scmp.ge.s32.totalorder %s8, 4
      %s18 = sphi 0, %s20
      %s21 = sphi 0, %s18
      %s22 = sphi 0, %s21
      %s38 = sphi 0, %s22
      %s42 = sphi 0, %s42
      %s44 = sphi 0, %s42
      %s45 = sphi 0, %s44
      %s59 = sphi 0, %s45
      %s65 = sphi 0, %s67
      %s68 = sphi 0, %s65
      %s69 = sphi 0, %s68
      %s85 = sphi 0, %s69
    $region4: #{ghost_module1.6} parent=1 // loop_header_branch
      %11 = sbr.rel (%p9) target = $region8
    $region5: #{ghost_module1.6} parent=1 // loop_body
      %s13 = ssub.s32 %s8, 1
      %s14 = ssub.s32 %s8, 2
      %s15 = sadd.s32 %s8, 1
      %s16 = ssub.s32 %s8, %s15
      %p17 = scmp.eq.s32.totalorder %s16, 0
      %s19 = sadd.s32 %s18, 1
      %s20 = scalar_select %p17, %s18, %s19
      %p23 = pneg %p17
      %p24 = scmp.eq.s32.totalorder %s8, 1
      %p25 = por %p23, %p24
      %p26 = scmp.ne.s32.totalorder %s18, %s21
      %p27 = scmp.eq.s32.totalorder %s8, 0
      %p28 = por %p26, %p27
      %p29 = scmp.ne.s32.totalorder %s18, %s21
      %p30 = scmp.eq.s32.totalorder %s13, 1
      %p31 = por %p29, %p30
      %p32 = scmp.ne.s32.totalorder %s21, %s22
      %p33 = scmp.eq.s32.totalorder %s13, 0
      %p34 = por %p32, %p33
      %p35 = scmp.ne.s32.totalorder %s21, %s22
      %p36 = scmp.eq.s32.totalorder %s14, 1
      %p37 = por %p35, %p36
      %p39 = scmp.ne.s32.totalorder %s22, %s38
      %p40 = scmp.eq.s32.totalorder %s14, 0
      %p41 = por %p39, %p40
      %s43 = sadd.s32 %s42, 1
      %p46 = scmp.eq.s32.totalorder %s8, 1
      %p47 = scmp.ne.s32.totalorder %s42, %s44
      %p48 = scmp.eq.s32.totalorder %s8, 0
      %p49 = por %p47, %p48
      %p50 = scmp.ne.s32.totalorder %s42, %s44
      %p51 = scmp.eq.s32.totalorder %s13, 1
      %p52 = por %p50, %p51
      %p53 = scmp.ne.s32.totalorder %s44, %s45
      %p54 = scmp.eq.s32.totalorder %s13, 0
      %p55 = por %p53, %p54
      %p56 = scmp.ne.s32.totalorder %s44, %s45
      %p57 = scmp.eq.s32.totalorder %s14, 1
      %p58 = por %p56, %p57
      %p60 = scmp.ne.s32.totalorder %s45, %s59
      %p61 = scmp.eq.s32.totalorder %s14, 0
      %p62 = por %p60, %p61
      %s63 = ssub.s32 %s8, %s15
      %p64 = scmp.eq.s32.totalorder %s63, 0
      %s66 = sadd.s32 %s65, 1
      %s67 = scalar_select %p64, %s65, %s66
      %p70 = pneg %p64
      %p71 = scmp.eq.s32.totalorder %s8, 1
      %p72 = por %p70, %p71
      %p73 = scmp.ne.s32.totalorder %s65, %s68
      %p74 = scmp.eq.s32.totalorder %s8, 0
      %p75 = por %p73, %p74
      %p76 = scmp.ne.s32.totalorder %s65, %s68
      %p77 = scmp.eq.s32.totalorder %s13, 1
      %p78 = por %p76, %p77
      %p79 = scmp.ne.s32.totalorder %s68, %s69
      %p80 = scmp.eq.s32.totalorder %s13, 0
      %p81 = por %p79, %p80
      %p82 = scmp.ne.s32.totalorder %s68, %s69
      %p83 = scmp.eq.s32.totalorder %s14, 1
      %p84 = por %p82, %p83
      %p86 = scmp.ne.s32.totalorder %s69, %s85
      %p87 = scmp.eq.s32.totalorder %s14, 0
      %p88 = por %p86, %p87
      %p89 = scmp.le.s32.totalorder 1, %s8
      %p90 = scmp.lt.s32.totalorder %s8, 3
      %p91 = pnand %p89, %p90
      %p92 = pneg %p91
      // Predicated region
      $region9: #{ghost_module1.6} parent=5 // pred_check
        _
      $region10: #{ghost_module1.6} parent=5 // pred_check_branch
        %94 = sbr.rel (%p91) target = $region12
      $region11: #{ghost_module1.6} parent=5 // pred_region
        %s95 = ssub.s32 %s8, 1
        // Predicated region
        $region13: #{ghost_module1.6} parent=11 // pred_check
          %p96 = pneg %p55
        $region14: #{ghost_module1.6} parent=11 // pred_check_branch
          %98 = sbr.rel (%p96) target = $region16
        $region15: #{ghost_module1.6} parent=11 // pred_region
          _
        $region16: #{ghost_module1.6} parent=11 // pred_fallthru
          _
      $region12: #{ghost_module1.6} parent=5 // pred_fallthru
        _
      %p99 = scmp.lt.s32.totalorder %s8, 2
      // Predicated region
      $region17: #{ghost_module1.6} parent=5 // pred_check
        %p100 = pneg %p99
      $region18: #{ghost_module1.6} parent=5 // pred_check_branch
        %102 = sbr.rel (%p100) target = $region20
      $region19: #{ghost_module1.6} parent=5 // pred_region
        // Predicated region
        $region21: #{ghost_module1.6} parent=19 // pred_check
          %p103 = pneg %p28
        $region22: #{ghost_module1.6} parent=19 // pred_check_branch
          %105 = sbr.rel (%p103) target = $region24
        $region23: #{ghost_module1.6} parent=19 // pred_region
          %s106 = sand.u32 %s18, 1
          %s107 = sand.u32 %s18, 1
          %s108 = smul.addr %s107, 36
          %s109 = scalar_lea.vmem [#allocation2], %s108
          %s110 = smul.addr %s8, 2
          %s111 = smul.addr %s110, 2
          %s112 = scalar_lea.vmem %s0, %s111
          // Predicated region
          $region25: #{ghost_module1.6} parent=23 // pred_check
            _
          $region26: #{ghost_module1.6} parent=23 // pred_check_branch
            %114 = sbr.rel (0) target = $region28
          $region27: #{ghost_module1.6} parent=23 // pred_region
            // Predicated region
            $region29: #{ghost_module1.6} parent=27 // pred_check
              _
            $region30: #{ghost_module1.6} parent=27 // pred_check_branch
              %116 = sbr.rel target = $region32
            $region31: #{ghost_module1.6} parent=27 // pred_region
              // Predicated region
              $region44: #{ghost_module1.6} parent=31 // pred_check
                _
              $region45: #{ghost_module1.6} parent=31 // pred_check_branch
                %147 = sbr.rel (0) target = $region47
              $region46: #{ghost_module1.6} parent=31 // pred_region
                loop: start=0, step=1, limit=1
                $region48: #{ghost_module1.6} parent=46 // loop_pre_header
                  _
                $region49: #{ghost_module1.6} parent=46 // loop_header
                  %s149 = sphi 0, %s153
                  %p150 = scmp.ge.s32.totalorder %s149, 1
                  %s154 = sphi %s112, %s112
                  %s155 = sphi %s109, %s109
                $region50: #{ghost_module1.6} parent=46 // loop_header_branch
                  %152 = sbr.rel (%p150) target = $region54
                $region51: #{ghost_module1.6} parent=46 // loop_body
                  _
                $region52: #{ghost_module1.6} parent=46 // loop_footer
                  %s153 = sadd.s32 1, %s149
                $region53: #{ghost_module1.6} parent=46 // loop_footer_branch
                  %148 = sbr.rel target = $region49
                $region54: #{ghost_module1.6} parent=46 // loop_exit
                  _
                loop: start=0, step=1, limit=1
                $region55: #{ghost_module1.6} parent=46 // loop_pre_header
                  _
                $region56: #{ghost_module1.6} parent=46 // loop_header
                  %s158 = sphi 0, %s162
                  %p159 = scmp.ge.s32.totalorder %s158, 1
                  %s163 = sphi %s112, %s112
                  %s164 = sphi %s109, %s109
                $region57: #{ghost_module1.6} parent=46 // loop_header_branch
                  %161 = sbr.rel (%p159) target = $region61
                $region58: #{ghost_module1.6} parent=46 // loop_body
                  %v165 = vld [vmem:[%s163] sm:$0xf]
                  %166 = vst [vmem:[%s164] sm:$0xf] %v165
                  %v167 = vld [vmem:[%s163 + $0x8] sm:$0xf]
                  %168 = vst [vmem:[%s164 + $0x4] sm:$0xf] %v167
                  %v169 = vld [vmem:[%s163 + $0x10] sm:$0xf]
                  %170 = vst [vmem:[%s164 + $0x8] sm:$0xf] %v169
                  %v171 = vld [vmem:[%s163 + $0x18] sm:$0xf]
                  %172 = vst [vmem:[%s164 + $0xc] sm:$0xf] %v171
                  %v173 = vld [vmem:[%s163 + $0x20] sm:$0xf]
                  %174 = vst [vmem:[%s164 + $0x10] sm:$0xf] %v173
                  %v175 = vld [vmem:[%s163 + $0x28] sm:$0xf]
                  %176 = vst [vmem:[%s164 + $0x14] sm:$0xf] %v175
                  %v177 = vld [vmem:[%s163 + $0x30] sm:$0xf]
                  %178 = vst [vmem:[%s164 + $0x18] sm:$0xf] %v177
                  %v179 = vld [vmem:[%s163 + $0x38] sm:$0xf]
                  %180 = vst [vmem:[%s164 + $0x1c] sm:$0xf] %v179
                  %v181 = vld [vmem:[%s163 + $0x40] sm:$0xf]
                  %182 = vst [vmem:[%s164 + $0x20] sm:$0xf] %v181
                $region59: #{ghost_module1.6} parent=46 // loop_footer
                  %s162 = sadd.s32 1, %s158
                $region60: #{ghost_module1.6} parent=46 // loop_footer_branch
                  %157 = sbr.rel target = $region56
                $region61: #{ghost_module1.6} parent=46 // loop_exit
                  _
              $region47: #{ghost_module1.6} parent=31 // pred_fallthru
                _
            $region32: #{ghost_module1.6} parent=27 // pred_fallthru
              _
            // Predicated region
            $region33: #{ghost_module1.6} parent=27 // pred_check
              _
            $region34: #{ghost_module1.6} parent=27 // pred_check_branch
              %118 = sbr.rel (0) target = $region36
            $region35: #{ghost_module1.6} parent=27 // pred_region
              loop: start=0, step=1, limit=1
              $region37: #{ghost_module1.6} parent=35 // loop_pre_header
                _
              $region38: #{ghost_module1.6} parent=35 // loop_header
                %s121 = sphi 0, %s125
                %p122 = scmp.ge.s32.totalorder %s121, 1
                %s126 = sphi %s112, %s112
                %s127 = sphi %s109, %s109
              $region39: #{ghost_module1.6} parent=35 // loop_header_branch
                %124 = sbr.rel (%p122) target = $region43
              $region40: #{ghost_module1.6} parent=35 // loop_body
                %v128 = vld [vmem:[%s126] sm:$0xf]
                %129 = vst [vmem:[%s127] sm:$0xf] %v128
                %v130 = vld [vmem:[%s126 + $0x8] sm:$0xf]
                %131 = vst [vmem:[%s127 + $0x4] sm:$0xf] %v130
                %v132 = vld [vmem:[%s126 + $0x10] sm:$0xf]
                %133 = vst [vmem:[%s127 + $0x8] sm:$0xf] %v132
                %v134 = vld [vmem:[%s126 + $0x18] sm:$0xf]
                %135 = vst [vmem:[%s127 + $0xc] sm:$0xf] %v134
                %v136 = vld [vmem:[%s126 + $0x20] sm:$0xf]
                %137 = vst [vmem:[%s127 + $0x10] sm:$0xf] %v136
                %v138 = vld [vmem:[%s126 + $0x28] sm:$0xf]
                %139 = vst [vmem:[%s127 + $0x14] sm:$0xf] %v138
                %v140 = vld [vmem:[%s126 + $0x30] sm:$0xf]
                %141 = vst [vmem:[%s127 + $0x18] sm:$0xf] %v140
                %v142 = vld [vmem:[%s126 + $0x38] sm:$0xf]
                %143 = vst [vmem:[%s127 + $0x1c] sm:$0xf] %v142
                %v144 = vld [vmem:[%s126 + $0x40] sm:$0xf]
                %145 = vst [vmem:[%s127 + $0x20] sm:$0xf] %v144
              $region41: #{ghost_module1.6} parent=35 // loop_footer
                %s125 = sadd.s32 1, %s121
              $region42: #{ghost_module1.6} parent=35 // loop_footer_branch
                %120 = sbr.rel target = $region38
              $region43: #{ghost_module1.6} parent=35 // loop_exit
                _
            $region36: #{ghost_module1.6} parent=27 // pred_fallthru
              _
          $region28: #{ghost_module1.6} parent=23 // pred_fallthru
            _
          %183 = vnop
        $region24: #{ghost_module1.6} parent=19 // pred_fallthru
          _
      $region20: #{ghost_module1.6} parent=5 // pred_fallthru
        _
      %p184 = scmp.le.s32.totalorder 1, %s8
      %p185 = scmp.lt.s32.totalorder %s8, 3
      %p186 = pnand %p184, %p185
      %p187 = pneg %p186
      // Predicated region
      $region62: #{ghost_module1.6} parent=5 // pred_check
        _
      $region63: #{ghost_module1.6} parent=5 // pred_check_branch
        %189 = sbr.rel (%p186) target = $region65
      $region64: #{ghost_module1.6} parent=5 // pred_region
        %s190 = ssub.s32 %s8, 1
        %s191 = sand.u32 %s21, 1
        %s192 = sand.u32 %s21, 1
        %s193 = smul.addr %s192, 36
        %s194 = scalar_lea.vmem [#allocation2], %s193
        // Predicated region
        $region66: #{ghost_module1.6} parent=64 // pred_check
          %p195 = pneg %p34
        $region67: #{ghost_module1.6} parent=64 // pred_check_branch
          %197 = sbr.rel (%p195) target = $region69
        $region68: #{ghost_module1.6} parent=64 // pred_region
          _
        $region69: #{ghost_module1.6} parent=64 // pred_fallthru
          _
        %s198 = sand.u32 %s21, 1
        %s199 = sand.u32 %s21, 1
        %s200 = smul.addr %s199, 36
        %s201 = scalar_lea.vmem [#allocation2], %s200
        %p202 = pneg %p34
        %p203 = pneg %p31
        %p204 = pneg %p55
        %p205 = pneg %p52
        %p206 = pneg %p81
        %p207 = pneg %p78
        %p208 = scmp.lt.s32.totalorder %s13, 1
        %s209 = scalar_select %p208, %s13, 1
        %s210 = smul.addr %s209, 2
        %s211 = smul.addr %s210, 2
        %s212 = scalar_lea.vmem %s2, %s211
        %p213 = scmp.lt.s32.totalorder %s13, 1
        %s214 = scalar_select %p213, %s13, 1
        %s215 = smul.addr %s214, 2
        %s216 = smul.addr %s215, 2
        %s217 = scalar_lea.vmem %s2, %s216
        %v218 = vld [vmem:[%s1] sm:$0x3]
        %v219 = vld [vmem:[%s194] sm:$0xf]
        %s220 = scalar_lea.vmem %s1, 2
        %v221 = vld [vmem:[%s220] sm:$0x3]
        %s222 = scalar_lea.vmem %s194, 4 [#allocation2]
        %v223 = vld [vmem:[%s222] sm:$0xf]
        %v226 = vunpack.c.l.s4 1983009808
        %v227 = vunpack.c.0.s8 %v226
        %v228 = vlaneseq
        %v229 = vshrl.u32 %v228, 7
        %v230 = vsub.s32 %v227, %v229
        %v231 = vrot.slane %v223, %v230
        %v232 = vcombine.high %v231, %v231
        %vm233 = vcmask 15360
        %v235 = vsel %vm233, %v221, 0
        %vm237 = vcmask 1041408
        %v238 = vsel %vm237, %v231, 0
        %v240 = vsel %vm237, %v232, 0
        %242 = vmatprep.subr.mxu0 %v240
        %243 = vmatpush1.msra.mxu0 %v238
        %244 = vmatprep.subr.mxu0 0.0
        %245 = vmatpush1.msra.mxu0 0.0
        %246 = vmatprep.subr.mxu0 0.0
        %247 = vmatpush1.msra.mxu0 0.0
        %248 = vmatprep.subr.mxu0 0.0
        %249 = vmatpush1.msra.mxu0 0.0
        %250 = vmatprep.subr.mxu0 0.0
        %251 = vmatpush1.msra.mxu0 0.0
        %252 = vmatprep.subr.mxu0 0.0
        %253 = vmatpush1.msra.mxu0 0.0
        %254 = vmatprep.subr.mxu0 0.0
        %255 = vmatpush1.msra.mxu0 0.0
        %256 = vmatprep.subr.mxu0 0.0
        %257 = vmatpush1.msra.mxu0 0.0
        %258 = vmatprep.subr.mxu0 0.0
        %259 = vmatpush1.msra.mxu0 0.0
        %260 = vmatprep.subr.mxu0 0.0
        %261 = vmatpush1.msra.mxu0 0.0
        %262 = vmatprep.subr.mxu0 0.0
        %263 = vmatpush1.msra.mxu0 0.0
        %264 = vmatprep.subr.mxu0 0.0
        %265 = vmatpush1.msra.mxu0 0.0
        %266 = vmatprep.subr.mxu0 0.0
        %267 = vmatpush1.msra.mxu0 0.0
        %268 = vmatprep.subr.mxu0 0.0
        %269 = vmatpush1.msra.mxu0 0.0
        %270 = vmatprep.subr.mxu0 0.0
        %271 = vmatpush1.msra.mxu0 0.0
        %272 = vmatprep.subr.mxu0 0.0
        %273 = vmatpush1.msra.mxu0 0.0
        %274 = vmatprep.subr.mxu0 0.0
        %275 = vmatpush1.msra.mxu0 0.0
        %276 = vmatprep.subr.mxu0 0.0
        %277 = vmatpush1.msra.mxu0 0.0
        %278 = vmatprep.subr.mxu0 0.0
        %279 = vmatpush1.msra.mxu0 0.0
        %280 = vmatprep.subr.mxu0 0.0
        %281 = vmatpush1.msra.mxu0 0.0
        %282 = vmatprep.subr.mxu0 0.0
        %283 = vmatpush1.msra.mxu0 0.0
        %284 = vmatprep.subr.mxu0 0.0
        %285 = vmatpush1.msra.mxu0 0.0
        %286 = vmatprep.subr.mxu0 0.0
        %287 = vmatpush1.msra.mxu0 0.0
        %288 = vmatprep.subr.mxu0 0.0
        %289 = vmatpush1.msra.mxu0 0.0
        %290 = vmatprep.subr.mxu0 0.0
        %291 = vmatpush1.msra.mxu0 0.0
        %292 = vmatprep.subr.mxu0 0.0
        %293 = vmatpush1.msra.mxu0 0.0
        %294 = vmatprep.subr.mxu0 0.0
        %295 = vmatpush1.msra.mxu0 0.0
        %296 = vmatprep.subr.mxu0 0.0
        %297 = vmatpush1.msra.mxu0 0.0
        %298 = vmatprep.subr.mxu0 0.0
        %299 = vmatpush1.msra.mxu0 0.0
        %300 = vmatprep.subr.mxu0 0.0
        %301 = vmatpush1.msra.mxu0 0.0
        %302 = vmatprep.subr.mxu0 0.0
        %303 = vmatpush1.msra.mxu0 0.0
        %304 = vmatprep.subr.mxu0 0.0
        %305 = vmatpush1.msra.mxu0 0.0
        %306 = vmatprep.mubr.f32.mxu0 0.0
        %307 = vmatmul.mubr.f32.gmra.mrb[0].mxu0 %v235
        %v308 = vpop.f32.mrb[0].mxu0
        %v309 = vadd.f32 0.0, %v308
        %v310 = vpop.f32.mrb[0].mxu0
        %v311 = vadd.f32 0.0, %v310
        %312 = vdwg.mxu0
        %v315 = vunpack.c.l.s4 1983009808
        %v316 = vunpack.c.0.s8 %v315
        %v317 = vlaneseq
        %v318 = vshrl.u32 %v317, 7
        %v319 = vsub.s32 %v316, %v318
        %v320 = vrot.slane %v219, %v319
        %v321 = vcombine.high %v320, %v320
        %v323 = vsel %vm233, %v218, 0
        %v325 = vsel %vm237, %v320, 0
        %v327 = vsel %vm237, %v321, 0
        %329 = vmatprep.subr.mxu0 %v327
        %330 = vmatpush1.msra.mxu0 %v325
        %331 = vmatprep.subr.mxu0 0.0
        %332 = vmatpush1.msra.mxu0 0.0
        %333 = vmatprep.subr.mxu0 0.0
        %334 = vmatpush1.msra.mxu0 0.0
        %335 = vmatprep.subr.mxu0 0.0
        %336 = vmatpush1.msra.mxu0 0.0
        %337 = vmatprep.subr.mxu0 0.0
        %338 = vmatpush1.msra.mxu0 0.0
        %339 = vmatprep.subr.mxu0 0.0
        %340 = vmatpush1.msra.mxu0 0.0
        %341 = vmatprep.subr.mxu0 0.0
        %342 = vmatpush1.msra.mxu0 0.0
        %343 = vmatprep.subr.mxu0 0.0
        %344 = vmatpush1.msra.mxu0 0.0
        %345 = vmatprep.subr.mxu0 0.0
        %346 = vmatpush1.msra.mxu0 0.0
        %347 = vmatprep.subr.mxu0 0.0
        %348 = vmatpush1.msra.mxu0 0.0
        %349 = vmatprep.subr.mxu0 0.0
        %350 = vmatpush1.msra.mxu0 0.0
        %351 = vmatprep.subr.mxu0 0.0
        %352 = vmatpush1.msra.mxu0 0.0
        %353 = vmatprep.subr.mxu0 0.0
        %354 = vmatpush1.msra.mxu0 0.0
        %355 = vmatprep.subr.mxu0 0.0
        %356 = vmatpush1.msra.mxu0 0.0
        %357 = vmatprep.subr.mxu0 0.0
        %358 = vmatpush1.msra.mxu0 0.0
        %359 = vmatprep.subr.mxu0 0.0
        %360 = vmatpush1.msra.mxu0 0.0
        %361 = vmatprep.subr.mxu0 0.0
        %362 = vmatpush1.msra.mxu0 0.0
        %363 = vmatprep.subr.mxu0 0.0
        %364 = vmatpush1.msra.mxu0 0.0
        %365 = vmatprep.subr.mxu0 0.0
        %366 = vmatpush1.msra.mxu0 0.0
        %367 = vmatprep.subr.mxu0 0.0
        %368 = vmatpush1.msra.mxu0 0.0
        %369 = vmatprep.subr.mxu0 0.0
        %370 = vmatpush1.msra.mxu0 0.0
        %371 = vmatprep.subr.mxu0 0.0
        %372 = vmatpush1.msra.mxu0 0.0
        %373 = vmatprep.subr.mxu0 0.0
        %374 = vmatpush1.msra.mxu0 0.0
        %375 = vmatprep.subr.mxu0 0.0
        %376 = vmatpush1.msra.mxu0 0.0
        %377 = vmatprep.subr.mxu0 0.0
        %378 = vmatpush1.msra.mxu0 0.0
        %379 = vmatprep.subr.mxu0 0.0
        %380 = vmatpush1.msra.mxu0 0.0
        %381 = vmatprep.subr.mxu0 0.0
        %382 = vmatpush1.msra.mxu0 0.0
        %383 = vmatprep.subr.mxu0 0.0
        %384 = vmatpush1.msra.mxu0 0.0
        %385 = vmatprep.subr.mxu0 0.0
        %386 = vmatpush1.msra.mxu0 0.0
        %387 = vmatprep.subr.mxu0 0.0
        %388 = vmatpush1.msra.mxu0 0.0
        %389 = vmatprep.subr.mxu0 0.0
        %390 = vmatpush1.msra.mxu0 0.0
        %391 = vmatprep.subr.mxu0 0.0
        %392 = vmatpush1.msra.mxu0 0.0
        %393 = vmatprep.mubr.f32.mxu0 0.0
        %394 = vmatmul.mubr.f32.gmra.mrb[0].mxu0 %v323
        %v395 = vpop.f32.mrb[0].mxu0
        %v396 = vadd.f32 %v309, %v395
        %v397 = vpop.f32.mrb[0].mxu0
        %v398 = vadd.f32 %v311, %v397
        %399 = vdwg.mxu0
        %s400 = scalar_lea.vmem %s1, 4
        %v401 = vld [vmem:[%s400] sm:$0x3]
        %s402 = scalar_lea.vmem %s194, 8 [#allocation2]
        %v403 = vld [vmem:[%s402] sm:$0xf]
        %v406 = vunpack.c.l.s4 1983009808
        %v407 = vunpack.c.0.s8 %v406
        %v408 = vlaneseq
        %v409 = vshrl.u32 %v408, 7
        %v410 = vsub.s32 %v407, %v409
        %v411 = vrot.slane %v403, %v410
        %v412 = vcombine.high %v411, %v411
        %v414 = vsel %vm233, %v401, 0
        %v416 = vsel %vm237, %v411, 0
        %v418 = vsel %vm237, %v412, 0
        %420 = vmatprep.subr.mxu0 %v418
        %421 = vmatpush1.msra.mxu0 %v416
        %422 = vmatprep.subr.mxu0 0.0
        %423 = vmatpush1.msra.mxu0 0.0
        %424 = vmatprep.subr.mxu0 0.0
        %425 = vmatpush1.msra.mxu0 0.0
        %426 = vmatprep.subr.mxu0 0.0
        %427 = vmatpush1.msra.mxu0 0.0
        %428 = vmatprep.subr.mxu0 0.0
        %429 = vmatpush1.msra.mxu0 0.0
        %430 = vmatprep.subr.mxu0 0.0
        %431 = vmatpush1.msra.mxu0 0.0
        %432 = vmatprep.subr.mxu0 0.0
        %433 = vmatpush1.msra.mxu0 0.0
        %434 = vmatprep.subr.mxu0 0.0
        %435 = vmatpush1.msra.mxu0 0.0
        %436 = vmatprep.subr.mxu0 0.0
        %437 = vmatpush1.msra.mxu0 0.0
        %438 = vmatprep.subr.mxu0 0.0
        %439 = vmatpush1.msra.mxu0 0.0
        %440 = vmatprep.subr.mxu0 0.0
        %441 = vmatpush1.msra.mxu0 0.0
        %442 = vmatprep.subr.mxu0 0.0
        %443 = vmatpush1.msra.mxu0 0.0
        %444 = vmatprep.subr.mxu0 0.0
        %445 = vmatpush1.msra.mxu0 0.0
        %446 = vmatprep.subr.mxu0 0.0
        %447 = vmatpush1.msra.mxu0 0.0
        %448 = vmatprep.subr.mxu0 0.0
        %449 = vmatpush1.msra.mxu0 0.0
        %450 = vmatprep.subr.mxu0 0.0
        %451 = vmatpush1.msra.mxu0 0.0
        %452 = vmatprep.subr.mxu0 0.0
        %453 = vmatpush1.msra.mxu0 0.0
        %454 = vmatprep.subr.mxu0 0.0
        %455 = vmatpush1.msra.mxu0 0.0
        %456 = vmatprep.subr.mxu0 0.0
        %457 = vmatpush1.msra.mxu0 0.0
        %458 = vmatprep.subr.mxu0 0.0
        %459 = vmatpush1.msra.mxu0 0.0
        %460 = vmatprep.subr.mxu0 0.0
        %461 = vmatpush1.msra.mxu0 0.0
        %462 = vmatprep.subr.mxu0 0.0
        %463 = vmatpush1.msra.mxu0 0.0
        %464 = vmatprep.subr.mxu0 0.0
        %465 = vmatpush1.msra.mxu0 0.0
        %466 = vmatprep.subr.mxu0 0.0
        %467 = vmatpush1.msra.mxu0 0.0
        %468 = vmatprep.subr.mxu0 0.0
        %469 = vmatpush1.msra.mxu0 0.0
        %470 = vmatprep.subr.mxu0 0.0
        %471 = vmatpush1.msra.mxu0 0.0
        %472 = vmatprep.subr.mxu0 0.0
        %473 = vmatpush1.msra.mxu0 0.0
        %474 = vmatprep.subr.mxu0 0.0
        %475 = vmatpush1.msra.mxu0 0.0
        %476 = vmatprep.subr.mxu0 0.0
        %477 = vmatpush1.msra.mxu0 0.0
        %478 = vmatprep.subr.mxu0 0.0
        %479 = vmatpush1.msra.mxu0 0.0
        %480 = vmatprep.subr.mxu0 0.0
        %481 = vmatpush1.msra.mxu0 0.0
        %482 = vmatprep.subr.mxu0 0.0
        %483 = vmatpush1.msra.mxu0 0.0
        %484 = vmatprep.mubr.f32.mxu0 0.0
        %485 = vmatmul.mubr.f32.gmra.mrb[0].mxu0 %v414
        %v486 = vpop.f32.mrb[0].mxu0
        %v487 = vadd.f32 0.0, %v486
        %v488 = vpop.f32.mrb[0].mxu0
        %v489 = vadd.f32 0.0, %v488
        %490 = vdwg.mxu0
        %v491 = vadd.f32 %v396, %v487
        %v492 = vadd.f32 %v398, %v489
        %s493 = scalar_lea.vmem %s1, 6
        %v494 = vld [vmem:[%s493] sm:$0x3]
        %s495 = scalar_lea.vmem %s194, 12 [#allocation2]
        %v496 = vld [vmem:[%s495] sm:$0xf]
        %v499 = vunpack.c.l.s4 1983009808
        %v500 = vunpack.c.0.s8 %v499
        %v501 = vlaneseq
        %v502 = vshrl.u32 %v501, 7
        %v503 = vsub.s32 %v500, %v502
        %v504 = vrot.slane %v496, %v503
        %v505 = vcombine.high %v504, %v504
        %v507 = vsel %vm233, %v494, 0
        %v509 = vsel %vm237, %v504, 0
        %v511 = vsel %vm237, %v505, 0
        %513 = vmatprep.subr.mxu0 %v511
        %514 = vmatpush1.msra.mxu0 %v509
        %515 = vmatprep.subr.mxu0 0.0
        %516 = vmatpush1.msra.mxu0 0.0
        %517 = vmatprep.subr.mxu0 0.0
        %518 = vmatpush1.msra.mxu0 0.0
        %519 = vmatprep.subr.mxu0 0.0
        %520 = vmatpush1.msra.mxu0 0.0
        %521 = vmatprep.subr.mxu0 0.0
        %522 = vmatpush1.msra.mxu0 0.0
        %523 = vmatprep.subr.mxu0 0.0
        %524 = vmatpush1.msra.mxu0 0.0
        %525 = vmatprep.subr.mxu0 0.0
        %526 = vmatpush1.msra.mxu0 0.0
        %527 = vmatprep.subr.mxu0 0.0
        %528 = vmatpush1.msra.mxu0 0.0
        %529 = vmatprep.subr.mxu0 0.0
        %530 = vmatpush1.msra.mxu0 0.0
        %531 = vmatprep.subr.mxu0 0.0
        %532 = vmatpush1.msra.mxu0 0.0
        %533 = vmatprep.subr.mxu0 0.0
        %534 = vmatpush1.msra.mxu0 0.0
        %535 = vmatprep.subr.mxu0 0.0
        %536 = vmatpush1.msra.mxu0 0.0
        %537 = vmatprep.subr.mxu0 0.0
        %538 = vmatpush1.msra.mxu0 0.0
        %539 = vmatprep.subr.mxu0 0.0
        %540 = vmatpush1.msra.mxu0 0.0
        %541 = vmatprep.subr.mxu0 0.0
        %542 = vmatpush1.msra.mxu0 0.0
        %543 = vmatprep.subr.mxu0 0.0
        %544 = vmatpush1.msra.mxu0 0.0
        %545 = vmatprep.subr.mxu0 0.0
        %546 = vmatpush1.msra.mxu0 0.0
        %547 = vmatprep.subr.mxu0 0.0
        %548 = vmatpush1.msra.mxu0 0.0
        %549 = vmatprep.subr.mxu0 0.0
        %550 = vmatpush1.msra.mxu0 0.0
        %551 = vmatprep.subr.mxu0 0.0
        %552 = vmatpush1.msra.mxu0 0.0
        %553 = vmatprep.subr.mxu0 0.0
        %554 = vmatpush1.msra.mxu0 0.0
        %555 = vmatprep.subr.mxu0 0.0
        %556 = vmatpush1.msra.mxu0 0.0
        %557 = vmatprep.subr.mxu0 0.0
        %558 = vmatpush1.msra.mxu0 0.0
        %559 = vmatprep.subr.mxu0 0.0
        %560 = vmatpush1.msra.mxu0 0.0
        %561 = vmatprep.subr.mxu0 0.0
        %562 = vmatpush1.msra.mxu0 0.0
        %563 = vmatprep.subr.mxu0 0.0
        %564 = vmatpush1.msra.mxu0 0.0
        %565 = vmatprep.subr.mxu0 0.0
        %566 = vmatpush1.msra.mxu0 0.0
        %567 = vmatprep.subr.mxu0 0.0
        %568 = vmatpush1.msra.mxu0 0.0
        %569 = vmatprep.subr.mxu0 0.0
        %570 = vmatpush1.msra.mxu0 0.0
        %571 = vmatprep.subr.mxu0 0.0
        %572 = vmatpush1.msra.mxu0 0.0
        %573 = vmatprep.subr.mxu0 0.0
        %574 = vmatpush1.msra.mxu0 0.0
        %575 = vmatprep.subr.mxu0 0.0
        %576 = vmatpush1.msra.mxu0 0.0
        %577 = vmatprep.mubr.f32.mxu0 0.0
        %578 = vmatmul.mubr.f32.gmra.mrb[0].mxu0 %v507
        %v579 = vpop.f32.mrb[0].mxu0
        %v580 = vadd.f32 0.0, %v579
        %v581 = vpop.f32.mrb[0].mxu0
        %v582 = vadd.f32 0.0, %v581
        %583 = vdwg.mxu0
        %v584 = vadd.f32 %v491, %v580
        %v585 = vadd.f32 %v492, %v582
        %s586 = scalar_lea.vmem %s1, 8
        %v587 = vld [vmem:[%s586] sm:$0x3]
        %s588 = scalar_lea.vmem %s194, 16 [#allocation2]
        %v589 = vld [vmem:[%s588] sm:$0xf]
        %v592 = vunpack.c.l.s4 1983009808
        %v593 = vunpack.c.0.s8 %v592
        %v594 = vlaneseq
        %v595 = vshrl.u32 %v594, 7
        %v596 = vsub.s32 %v593, %v595
        %v597 = vrot.slane %v589, %v596
        %v598 = vcombine.high %v597, %v597
        %v600 = vsel %vm233, %v587, 0
        %v602 = vsel %vm237, %v597, 0
        %v604 = vsel %vm237, %v598, 0
        %606 = vmatprep.subr.mxu0 %v604
        %607 = vmatpush1.msra.mxu0 %v602
        %608 = vmatprep.subr.mxu0 0.0
        %609 = vmatpush1.msra.mxu0 0.0
        %610 = vmatprep.subr.mxu0 0.0
        %611 = vmatpush1.msra.mxu0 0.0
        %612 = vmatprep.subr.mxu0 0.0
        %613 = vmatpush1.msra.mxu0 0.0
        %614 = vmatprep.subr.mxu0 0.0
        %615 = vmatpush1.msra.mxu0 0.0
        %616 = vmatprep.subr.mxu0 0.0
        %617 = vmatpush1.msra.mxu0 0.0
        %618 = vmatprep.subr.mxu0 0.0
        %619 = vmatpush1.msra.mxu0 0.0
        %620 = vmatprep.subr.mxu0 0.0
        %621 = vmatpush1.msra.mxu0 0.0
        %622 = vmatprep.subr.mxu0 0.0
        %623 = vmatpush1.msra.mxu0 0.0
        %624 = vmatprep.subr.mxu0 0.0
        %625 = vmatpush1.msra.mxu0 0.0
        %626 = vmatprep.subr.mxu0 0.0
        %627 = vmatpush1.msra.mxu0 0.0
        %628 = vmatprep.subr.mxu0 0.0
        %629 = vmatpush1.msra.mxu0 0.0
        %630 = vmatprep.subr.mxu0 0.0
        %631 = vmatpush1.msra.mxu0 0.0
        %632 = vmatprep.subr.mxu0 0.0
        %633 = vmatpush1.msra.mxu0 0.0
        %634 = vmatprep.subr.mxu0 0.0
        %635 = vmatpush1.msra.mxu0 0.0
        %636 = vmatprep.subr.mxu0 0.0
        %637 = vmatpush1.msra.mxu0 0.0
        %638 = vmatprep.subr.mxu0 0.0
        %639 = vmatpush1.msra.mxu0 0.0
        %640 = vmatprep.subr.mxu0 0.0
        %641 = vmatpush1.msra.mxu0 0.0
        %642 = vmatprep.subr.mxu0 0.0
        %643 = vmatpush1.msra.mxu0 0.0
        %644 = vmatprep.subr.mxu0 0.0
        %645 = vmatpush1.msra.mxu0 0.0
        %646 = vmatprep.subr.mxu0 0.0
        %647 = vmatpush1.msra.mxu0 0.0
        %648 = vmatprep.subr.mxu0 0.0
        %649 = vmatpush1.msra.mxu0 0.0
        %650 = vmatprep.subr.mxu0 0.0
        %651 = vmatpush1.msra.mxu0 0.0
        %652 = vmatprep.subr.mxu0 0.0
        %653 = vmatpush1.msra.mxu0 0.0
        %654 = vmatprep.subr.mxu0 0.0
        %655 = vmatpush1.msra.mxu0 0.0
        %656 = vmatprep.subr.mxu0 0.0
        %657 = vmatpush1.msra.mxu0 0.0
        %658 = vmatprep.subr.mxu0 0.0
        %659 = vmatpush1.msra.mxu0 0.0
        %660 = vmatprep.subr.mxu0 0.0
        %661 = vmatpush1.msra.mxu0 0.0
        %662 = vmatprep.subr.mxu0 0.0
        %663 = vmatpush1.msra.mxu0 0.0
        %664 = vmatprep.subr.mxu0 0.0
        %665 = vmatpush1.msra.mxu0 0.0
        %666 = vmatprep.subr.mxu0 0.0
        %667 = vmatpush1.msra.mxu0 0.0
        %668 = vmatprep.subr.mxu0 0.0
        %669 = vmatpush1.msra.mxu0 0.0
        %670 = vmatprep.mubr.f32.mxu0 0.0
        %671 = vmatmul.mubr.f32.gmra.mrb[0].mxu0 %v600
        %v672 = vpop.f32.mrb[0].mxu0
        %v673 = vadd.f32 0.0, %v672
        %v674 = vpop.f32.mrb[0].mxu0
        %v675 = vadd.f32 0.0, %v674
        %676 = vdwg.mxu0
        %v677 = vadd.f32 %v584, %v673
        %v678 = vadd.f32 %v585, %v675
        %s679 = scalar_lea.vmem %s1, 10
        %v680 = vld [vmem:[%s679] sm:$0x3]
        %s681 = scalar_lea.vmem %s194, 20 [#allocation2]
        %v682 = vld [vmem:[%s681] sm:$0xf]
        %v685 = vunpack.c.l.s4 1983009808
        %v686 = vunpack.c.0.s8 %v685
        %v687 = vlaneseq
        %v688 = vshrl.u32 %v687, 7
        %v689 = vsub.s32 %v686, %v688
        %v690 = vrot.slane %v682, %v689
        %v691 = vcombine.high %v690, %v690
        %v693 = vsel %vm233, %v680, 0
        %v695 = vsel %vm237, %v690, 0
        %v697 = vsel %vm237, %v691, 0
        %699 = vmatprep.subr.mxu0 %v697
        %700 = vmatpush1.msra.mxu0 %v695
        %701 = vmatprep.subr.mxu0 0.0
        %702 = vmatpush1.msra.mxu0 0.0
        %703 = vmatprep.subr.mxu0 0.0
        %704 = vmatpush1.msra.mxu0 0.0
        %705 = vmatprep.subr.mxu0 0.0
        %706 = vmatpush1.msra.mxu0 0.0
        %707 = vmatprep.subr.mxu0 0.0
        %708 = vmatpush1.msra.mxu0 0.0
        %709 = vmatprep.subr.mxu0 0.0
        %710 = vmatpush1.msra.mxu0 0.0
        %711 = vmatprep.subr.mxu0 0.0
        %712 = vmatpush1.msra.mxu0 0.0
        %713 = vmatprep.subr.mxu0 0.0
        %714 = vmatpush1.msra.mxu0 0.0
        %715 = vmatprep.subr.mxu0 0.0
        %716 = vmatpush1.msra.mxu0 0.0
        %717 = vmatprep.subr.mxu0 0.0
        %718 = vmatpush1.msra.mxu0 0.0
        %719 = vmatprep.subr.mxu0 0.0
        %720 = vmatpush1.msra.mxu0 0.0
        %721 = vmatprep.subr.mxu0 0.0
        %722 = vmatpush1.msra.mxu0 0.0
        %723 = vmatprep.subr.mxu0 0.0
        %724 = vmatpush1.msra.mxu0 0.0
        %725 = vmatprep.subr.mxu0 0.0
        %726 = vmatpush1.msra.mxu0 0.0
        %727 = vmatprep.subr.mxu0 0.0
        %728 = vmatpush1.msra.mxu0 0.0
        %729 = vmatprep.subr.mxu0 0.0
        %730 = vmatpush1.msra.mxu0 0.0
        %731 = vmatprep.subr.mxu0 0.0
        %732 = vmatpush1.msra.mxu0 0.0
        %733 = vmatprep.subr.mxu0 0.0
        %734 = vmatpush1.msra.mxu0 0.0
        %735 = vmatprep.subr.mxu0 0.0
        %736 = vmatpush1.msra.mxu0 0.0
        %737 = vmatprep.subr.mxu0 0.0
        %738 = vmatpush1.msra.mxu0 0.0
        %739 = vmatprep.subr.mxu0 0.0
        %740 = vmatpush1.msra.mxu0 0.0
        %741 = vmatprep.subr.mxu0 0.0
        %742 = vmatpush1.msra.mxu0 0.0
        %743 = vmatprep.subr.mxu0 0.0
        %744 = vmatpush1.msra.mxu0 0.0
        %745 = vmatprep.subr.mxu0 0.0
        %746 = vmatpush1.msra.mxu0 0.0
        %747 = vmatprep.subr.mxu0 0.0
        %748 = vmatpush1.msra.mxu0 0.0
        %749 = vmatprep.subr.mxu0 0.0
        %750 = vmatpush1.msra.mxu0 0.0
        %751 = vmatprep.subr.mxu0 0.0
        %752 = vmatpush1.msra.mxu0 0.0
        %753 = vmatprep.subr.mxu0 0.0
        %754 = vmatpush1.msra.mxu0 0.0
        %755 = vmatprep.subr.mxu0 0.0
        %756 = vmatpush1.msra.mxu0 0.0
        %757 = vmatprep.subr.mxu0 0.0
        %758 = vmatpush1.msra.mxu0 0.0
        %759 = vmatprep.subr.mxu0 0.0
        %760 = vmatpush1.msra.mxu0 0.0
        %761 = vmatprep.subr.mxu0 0.0
        %762 = vmatpush1.msra.mxu0 0.0
        %763 = vmatprep.mubr.f32.mxu0 0.0
        %764 = vmatmul.mubr.f32.gmra.mrb[0].mxu0 %v693
        %v765 = vpop.f32.mrb[0].mxu0
        %v766 = vadd.f32 0.0, %v765
        %v767 = vpop.f32.mrb[0].mxu0
        %v768 = vadd.f32 0.0, %v767
        %769 = vdwg.mxu0
        %v770 = vadd.f32 %v677, %v766
        %v771 = vadd.f32 %v678, %v768
        %s772 = scalar_lea.vmem %s1, 12
        %v773 = vld [vmem:[%s772] sm:$0x3]
        %s774 = scalar_lea.vmem %s194, 24 [#allocation2]
        %v775 = vld [vmem:[%s774] sm:$0xf]
        %v778 = vunpack.c.l.s4 1983009808
        %v779 = vunpack.c.0.s8 %v778
        %v780 = vlaneseq
        %v781 = vshrl.u32 %v780, 7
        %v782 = vsub.s32 %v779, %v781
        %v783 = vrot.slane %v775, %v782
        %v784 = vcombine.high %v783, %v783
        %v786 = vsel %vm233, %v773, 0
        %v788 = vsel %vm237, %v783, 0
        %v790 = vsel %vm237, %v784, 0
        %792 = vmatprep.subr.mxu0 %v790
        %793 = vmatpush1.msra.mxu0 %v788
        %794 = vmatprep.subr.mxu0 0.0
        %795 = vmatpush1.msra.mxu0 0.0
        %796 = vmatprep.subr.mxu0 0.0
        %797 = vmatpush1.msra.mxu0 0.0
        %798 = vmatprep.subr.mxu0 0.0
        %799 = vmatpush1.msra.mxu0 0.0
        %800 = vmatprep.subr.mxu0 0.0
        %801 = vmatpush1.msra.mxu0 0.0
        %802 = vmatprep.subr.mxu0 0.0
        %803 = vmatpush1.msra.mxu0 0.0
        %804 = vmatprep.subr.mxu0 0.0
        %805 = vmatpush1.msra.mxu0 0.0
        %806 = vmatprep.subr.mxu0 0.0
        %807 = vmatpush1.msra.mxu0 0.0
        %808 = vmatprep.subr.mxu0 0.0
        %809 = vmatpush1.msra.mxu0 0.0
        %810 = vmatprep.subr.mxu0 0.0
        %811 = vmatpush1.msra.mxu0 0.0
        %812 = vmatprep.subr.mxu0 0.0
        %813 = vmatpush1.msra.mxu0 0.0
        %814 = vmatprep.subr.mxu0 0.0
        %815 = vmatpush1.msra.mxu0 0.0
        %816 = vmatprep.subr.mxu0 0.0
        %817 = vmatpush1.msra.mxu0 0.0
        %818 = vmatprep.subr.mxu0 0.0
        %819 = vmatpush1.msra.mxu0 0.0
        %820 = vmatprep.subr.mxu0 0.0
        %821 = vmatpush1.msra.mxu0 0.0
        %822 = vmatprep.subr.mxu0 0.0
        %823 = vmatpush1.msra.mxu0 0.0
        %824 = vmatprep.subr.mxu0 0.0
        %825 = vmatpush1.msra.mxu0 0.0
        %826 = vmatprep.subr.mxu0 0.0
        %827 = vmatpush1.msra.mxu0 0.0
        %828 = vmatprep.subr.mxu0 0.0
        %829 = vmatpush1.msra.mxu0 0.0
        %830 = vmatprep.subr.mxu0 0.0
        %831 = vmatpush1.msra.mxu0 0.0
        %832 = vmatprep.subr.mxu0 0.0
        %833 = vmatpush1.msra.mxu0 0.0
        %834 = vmatprep.subr.mxu0 0.0
        %835 = vmatpush1.msra.mxu0 0.0
        %836 = vmatprep.subr.mxu0 0.0
        %837 = vmatpush1.msra.mxu0 0.0
        %838 = vmatprep.subr.mxu0 0.0
        %839 = vmatpush1.msra.mxu0 0.0
        %840 = vmatprep.subr.mxu0 0.0
        %841 = vmatpush1.msra.mxu0 0.0
        %842 = vmatprep.subr.mxu0 0.0
        %843 = vmatpush1.msra.mxu0 0.0
        %844 = vmatprep.subr.mxu0 0.0
        %845 = vmatpush1.msra.mxu0 0.0
        %846 = vmatprep.subr.mxu0 0.0
        %847 = vmatpush1.msra.mxu0 0.0
        %848 = vmatprep.subr.mxu0 0.0
        %849 = vmatpush1.msra.mxu0 0.0
        %850 = vmatprep.subr.mxu0 0.0
        %851 = vmatpush1.msra.mxu0 0.0
        %852 = vmatprep.subr.mxu0 0.0
        %853 = vmatpush1.msra.mxu0 0.0
        %854 = vmatprep.subr.mxu0 0.0
        %855 = vmatpush1.msra.mxu0 0.0
        %856 = vmatprep.mubr.f32.mxu0 0.0
        %857 = vmatmul.mubr.f32.gmra.mrb[0].mxu0 %v786
        %v858 = vpop.f32.mrb[0].mxu0
        %v859 = vadd.f32 0.0, %v858
        %v860 = vpop.f32.mrb[0].mxu0
        %v861 = vadd.f32 0.0, %v860
        %862 = vdwg.mxu0
        %v863 = vadd.f32 %v770, %v859
        %v864 = vadd.f32 %v771, %v861
        %s865 = scalar_lea.vmem %s1, 14
        %v866 = vld [vmem:[%s865] sm:$0x3]
        %s867 = scalar_lea.vmem %s194, 28 [#allocation2]
        %v868 = vld [vmem:[%s867] sm:$0xf]
        %v871 = vunpack.c.l.s4 1983009808
        %v872 = vunpack.c.0.s8 %v871
        %v873 = vlaneseq
        %v874 = vshrl.u32 %v873, 7
        %v875 = vsub.s32 %v872, %v874
        %v876 = vrot.slane %v868, %v875
        %v877 = vcombine.high %v876, %v876
        %v879 = vsel %vm233, %v866, 0
        %v881 = vsel %vm237, %v876, 0
        %v883 = vsel %vm237, %v877, 0
        %885 = vmatprep.subr.mxu0 %v883
        %886 = vmatpush1.msra.mxu0 %v881
        %887 = vmatprep.subr.mxu0 0.0
        %888 = vmatpush1.msra.mxu0 0.0
        %889 = vmatprep.subr.mxu0 0.0
        %890 = vmatpush1.msra.mxu0 0.0
        %891 = vmatprep.subr.mxu0 0.0
        %892 = vmatpush1.msra.mxu0 0.0
        %893 = vmatprep.subr.mxu0 0.0
        %894 = vmatpush1.msra.mxu0 0.0
        %895 = vmatprep.subr.mxu0 0.0
        %896 = vmatpush1.msra.mxu0 0.0
        %897 = vmatprep.subr.mxu0 0.0
        %898 = vmatpush1.msra.mxu0 0.0
        %899 = vmatprep.subr.mxu0 0.0
        %900 = vmatpush1.msra.mxu0 0.0
        %901 = vmatprep.subr.mxu0 0.0
        %902 = vmatpush1.msra.mxu0 0.0
        %903 = vmatprep.subr.mxu0 0.0
        %904 = vmatpush1.msra.mxu0 0.0
        %905 = vmatprep.subr.mxu0 0.0
        %906 = vmatpush1.msra.mxu0 0.0
        %907 = vmatprep.subr.mxu0 0.0
        %908 = vmatpush1.msra.mxu0 0.0
        %909 = vmatprep.subr.mxu0 0.0
        %910 = vmatpush1.msra.mxu0 0.0
        %911 = vmatprep.subr.mxu0 0.0
        %912 = vmatpush1.msra.mxu0 0.0
        %913 = vmatprep.subr.mxu0 0.0
        %914 = vmatpush1.msra.mxu0 0.0
        %915 = vmatprep.subr.mxu0 0.0
        %916 = vmatpush1.msra.mxu0 0.0
        %917 = vmatprep.subr.mxu0 0.0
        %918 = vmatpush1.msra.mxu0 0.0
        %919 = vmatprep.subr.mxu0 0.0
        %920 = vmatpush1.msra.mxu0 0.0
        %921 = vmatprep.subr.mxu0 0.0
        %922 = vmatpush1.msra.mxu0 0.0
        %923 = vmatprep.subr.mxu0 0.0
        %924 = vmatpush1.msra.mxu0 0.0
        %925 = vmatprep.subr.mxu0 0.0
        %926 = vmatpush1.msra.mxu0 0.0
        %927 = vmatprep.subr.mxu0 0.0
        %928 = vmatpush1.msra.mxu0 0.0
        %929 = vmatprep.subr.mxu0 0.0
        %930 = vmatpush1.msra.mxu0 0.0
        %931 = vmatprep.subr.mxu0 0.0
        %932 = vmatpush1.msra.mxu0 0.0
        %933 = vmatprep.subr.mxu0 0.0
        %934 = vmatpush1.msra.mxu0 0.0
        %935 = vmatprep.subr.mxu0 0.0
        %936 = vmatpush1.msra.mxu0 0.0
        %937 = vmatprep.subr.mxu0 0.0
        %938 = vmatpush1.msra.mxu0 0.0
        %939 = vmatprep.subr.mxu0 0.0
        %940 = vmatpush1.msra.mxu0 0.0
        %941 = vmatprep.subr.mxu0 0.0
        %942 = vmatpush1.msra.mxu0 0.0
        %943 = vmatprep.subr.mxu0 0.0
        %944 = vmatpush1.msra.mxu0 0.0
        %945 = vmatprep.subr.mxu0 0.0
        %946 = vmatpush1.msra.mxu0 0.0
        %947 = vmatprep.subr.mxu0 0.0
        %948 = vmatpush1.msra.mxu0 0.0
        %949 = vmatprep.mubr.f32.mxu0 0.0
        %950 = vmatmul.mubr.f32.gmra.mrb[0].mxu0 %v879
        %v951 = vpop.f32.mrb[0].mxu0
        %v952 = vadd.f32 0.0, %v951
        %v953 = vpop.f32.mrb[0].mxu0
        %v954 = vadd.f32 0.0, %v953
        %955 = vdwg.mxu0
        %v956 = vadd.f32 %v863, %v952
        %v957 = vadd.f32 %v864, %v954
        %s958 = scalar_lea.vmem %s1, 16
        %v959 = vld [vmem:[%s958] sm:$0x3]
        %s960 = scalar_lea.vmem %s194, 32 [#allocation2]
        %v961 = vld [vmem:[%s960] sm:$0xf]
        %v964 = vunpack.c.l.s4 1983009808
        %v965 = vunpack.c.0.s8 %v964
        %v966 = vlaneseq
        %v967 = vshrl.u32 %v966, 7
        %v968 = vsub.s32 %v965, %v967
        %v969 = vrot.slane %v961, %v968
        %v970 = vcombine.high %v969, %v969
        %v972 = vsel %vm233, %v959, 0
        %v974 = vsel %vm237, %v969, 0
        %v976 = vsel %vm237, %v970, 0
        %978 = vmatprep.subr.mxu0 %v976
        %979 = vmatpush1.msra.mxu0 %v974
        %980 = vmatprep.subr.mxu0 0.0
        %981 = vmatpush1.msra.mxu0 0.0
        %982 = vmatprep.subr.mxu0 0.0
        %983 = vmatpush1.msra.mxu0 0.0
        %984 = vmatprep.subr.mxu0 0.0
        %985 = vmatpush1.msra.mxu0 0.0
        %986 = vmatprep.subr.mxu0 0.0
        %987 = vmatpush1.msra.mxu0 0.0
        %988 = vmatprep.subr.mxu0 0.0
        %989 = vmatpush1.msra.mxu0 0.0
        %990 = vmatprep.subr.mxu0 0.0
        %991 = vmatpush1.msra.mxu0 0.0
        %992 = vmatprep.subr.mxu0 0.0
        %993 = vmatpush1.msra.mxu0 0.0
        %994 = vmatprep.subr.mxu0 0.0
        %995 = vmatpush1.msra.mxu0 0.0
        %996 = vmatprep.subr.mxu0 0.0
        %997 = vmatpush1.msra.mxu0 0.0
        %998 = vmatprep.subr.mxu0 0.0
        %999 = vmatpush1.msra.mxu0 0.0
        %1000 = vmatprep.subr.mxu0 0.0
        %1001 = vmatpush1.msra.mxu0 0.0
        %1002 = vmatprep.subr.mxu0 0.0
        %1003 = vmatpush1.msra.mxu0 0.0
        %1004 = vmatprep.subr.mxu0 0.0
        %1005 = vmatpush1.msra.mxu0 0.0
        %1006 = vmatprep.subr.mxu0 0.0
        %1007 = vmatpush1.msra.mxu0 0.0
        %1008 = vmatprep.subr.mxu0 0.0
        %1009 = vmatpush1.msra.mxu0 0.0
        %1010 = vmatprep.subr.mxu0 0.0
        %1011 = vmatpush1.msra.mxu0 0.0
        %1012 = vmatprep.subr.mxu0 0.0
        %1013 = vmatpush1.msra.mxu0 0.0
        %1014 = vmatprep.subr.mxu0 0.0
        %1015 = vmatpush1.msra.mxu0 0.0
        %1016 = vmatprep.subr.mxu0 0.0
        %1017 = vmatpush1.msra.mxu0 0.0
        %1018 = vmatprep.subr.mxu0 0.0
        %1019 = vmatpush1.msra.mxu0 0.0
        %1020 = vmatprep.subr.mxu0 0.0
        %1021 = vmatpush1.msra.mxu0 0.0
        %1022 = vmatprep.subr.mxu0 0.0
        %1023 = vmatpush1.msra.mxu0 0.0
        %1024 = vmatprep.subr.mxu0 0.0
        %1025 = vmatpush1.msra.mxu0 0.0
        %1026 = vmatprep.subr.mxu0 0.0
        %1027 = vmatpush1.msra.mxu0 0.0
        %1028 = vmatprep.subr.mxu0 0.0
        %1029 = vmatpush1.msra.mxu0 0.0
        %1030 = vmatprep.subr.mxu0 0.0
        %1031 = vmatpush1.msra.mxu0 0.0
        %1032 = vmatprep.subr.mxu0 0.0
        %1033 = vmatpush1.msra.mxu0 0.0
        %1034 = vmatprep.subr.mxu0 0.0
        %1035 = vmatpush1.msra.mxu0 0.0
        %1036 = vmatprep.subr.mxu0 0.0
        %1037 = vmatpush1.msra.mxu0 0.0
        %1038 = vmatprep.subr.mxu0 0.0
        %1039 = vmatpush1.msra.mxu0 0.0
        %1040 = vmatprep.subr.mxu0 0.0
        %1041 = vmatpush1.msra.mxu0 0.0
        %1042 = vmatprep.mubr.f32.mxu0 0.0
        %1043 = vmatmul.mubr.f32.gmra.mrb[0].mxu0 %v972
        %v1044 = vpop.f32.mrb[0].mxu0
        %v1045 = vadd.f32 0.0, %v1044
        %v1046 = vpop.f32.mrb[0].mxu0
        %v1047 = vadd.f32 0.0, %v1046
        %1048 = vdwg.mxu0
        %v1049 = vadd.f32 %v956, %v1045
        %v1050 = vadd.f32 %v957, %v1047
        %v1051 = vmax.f32 %v1049, 0.0
        %v1052 = vmax.f32 %v1050, 0.0
        %v1055 = vcombine.low %v1051, %v1052
        %v1057 = vunpack.c.l.s4 1983009808
        %v1058 = vunpack.c.0.s8 %v1057
        %v1059 = vlaneseq
        %v1060 = vshrl.u32 %v1059, 7
        %v1061 = vsub.s32 %v1058, %v1060
        %v1062 = vrot.slane %v1055, %v1061
        %1064 = vst [vmem:[%s217] sm:$0xf] %v1062
        %p1065 = scmp.lt.s32.totalorder %s13, 1
        %s1066 = scalar_select %p1065, %s13, 1
        %s1067 = smul.addr %s1066, 2
        %s1068 = smul.addr %s1067, 2
        %s1069 = scalar_lea.vmem %s2, %s1068
        // Predicated region
        $region70: #{ghost_module1.6} parent=64 // pred_check
          %p1070 = pneg %p78
        $region71: #{ghost_module1.6} parent=64 // pred_check_branch
          %1072 = sbr.rel (%p1070) target = $region73
        $region72: #{ghost_module1.6} parent=64 // pred_region
          _
        $region73: #{ghost_module1.6} parent=64 // pred_fallthru
          _
      $region65: #{ghost_module1.6} parent=5 // pred_fallthru
        _
      %p1073 = scmp.le.s32.totalorder 2, %s8
      // Predicated region
      $region74: #{ghost_module1.6} parent=5 // pred_check
        %p1074 = pneg %p1073
      $region75: #{ghost_module1.6} parent=5 // pred_check_branch
        %1076 = sbr.rel (%p1074) target = $region77
      $region76: #{ghost_module1.6} parent=5 // pred_region
        %s1077 = ssub.s32 %s8, 2
        // Predicated region
        $region78: #{ghost_module1.6} parent=76 // pred_check
          %p1078 = pneg %p84
        $region79: #{ghost_module1.6} parent=76 // pred_check_branch
          %1080 = sbr.rel (%p1078) target = $region81
        $region80: #{ghost_module1.6} parent=76 // pred_region
          %p1081 = scmp.lt.s32.totalorder %s14, 1
          %s1082 = scalar_select %p1081, %s14, 1
          %s1083 = smul.addr %s1082, 2
          %s1084 = smul.addr %s1083, 2
          %s1085 = scalar_lea.vmem %s2, %s1084
        $region81: #{ghost_module1.6} parent=76 // pred_fallthru
          _
      $region77: #{ghost_module1.6} parent=5 // pred_fallthru
        _
    $region6: #{ghost_module1.6} parent=1 // loop_footer
      %s12 = sadd.s32 1, %s8
    $region7: #{ghost_module1.6} parent=1 // loop_footer_branch
      %7 = sbr.rel target = $region3
    $region8: #{ghost_module1.6} parent=1 // loop_exit
      _

// kernel: ghost_module1.9
$region0: #{ghost_module1.9}
  #allocation0 [shape = 'u32[]', space=smem, size = 0x4, offset = 0x4, fixed_abs, tag = 'smem constant byte address 0x4 - core index']
  #allocation1 [shape = 'u32[144,128]{1,0:T(1,128)}', space=vmem, size = 0x12000, scoped, tag = 'internal scratch']
  %s0 = inlined_call_operand.vmem [shape: f32[2,12,256], index: 0, kind: input, shape index: {}]
  %s1 = inlined_call_operand.vmem [shape: f32[4,12], index: 1, kind: input, shape index: {}]
  %s2 = inlined_call_operand.vmem [shape: f32[4,1], index: 2, kind: input, shape index: {}]
  %s3 = inlined_call_operand.vmem [shape: f32[2,4,256], index: 3, kind: output, shape index: {}]
  %s4 = sld [smem:[#allocation0]]
  $region45: #{ghost_module1.9} parent=0
    _
  %s6 = ssub.s32 1, %s4
  %s7 = scalar_select 0, %s6, %s4
  loop: start=0, step=1, limit=4
  $region2: #{ghost_module1.9} parent=0 // loop_pre_header
    _
  $region3: #{ghost_module1.9} parent=0 // loop_header
    %s9 = sphi 0, %s13
    %p10 = scmp.ge.s32.totalorder %s9, 4
    %s19 = sphi 0, %s21
    %s22 = sphi 0, %s19
    %s23 = sphi 0, %s22
    %s39 = sphi 0, %s23
    %s43 = sphi 0, %s43
    %s45 = sphi 0, %s43
    %s46 = sphi 0, %s45
    %s60 = sphi 0, %s46
    %s64 = sphi 0, %s64
    %s66 = sphi 0, %s64
    %s67 = sphi 0, %s66
    %s81 = sphi 0, %s67
    %s87 = sphi 0, %s89
    %s90 = sphi 0, %s87
    %s91 = sphi 0, %s90
    %s107 = sphi 0, %s91
  $region4: #{ghost_module1.9} parent=0 // loop_header_branch
    %12 = sbr.rel (%p10) target = $region8
  $region5: #{ghost_module1.9} parent=0 // loop_body
    %s14 = ssub.s32 %s9, 1
    %s15 = ssub.s32 %s9, 2
    %s16 = sadd.s32 %s9, 1
    %s17 = ssub.s32 %s9, %s16
    %p18 = scmp.eq.s32.totalorder %s17, 0
    %s20 = sadd.s32 %s19, 1
    %s21 = scalar_select %p18, %s19, %s20
    %p24 = pneg %p18
    %p25 = scmp.eq.s32.totalorder %s9, 1
    %p26 = por %p24, %p25
    %p27 = scmp.ne.s32.totalorder %s19, %s22
    %p28 = scmp.eq.s32.totalorder %s9, 0
    %p29 = por %p27, %p28
    %p30 = scmp.ne.s32.totalorder %s19, %s22
    %p31 = scmp.eq.s32.totalorder %s14, 1
    %p32 = por %p30, %p31
    %p33 = scmp.ne.s32.totalorder %s22, %s23
    %p34 = scmp.eq.s32.totalorder %s14, 0
    %p35 = por %p33, %p34
    %p36 = scmp.ne.s32.totalorder %s22, %s23
    %p37 = scmp.eq.s32.totalorder %s15, 1
    %p38 = por %p36, %p37
    %p40 = scmp.ne.s32.totalorder %s23, %s39
    %p41 = scmp.eq.s32.totalorder %s15, 0
    %p42 = por %p40, %p41
    %s44 = sadd.s32 %s43, 1
    %p47 = scmp.eq.s32.totalorder %s9, 1
    %p48 = scmp.ne.s32.totalorder %s43, %s45
    %p49 = scmp.eq.s32.totalorder %s9, 0
    %p50 = por %p48, %p49
    %p51 = scmp.ne.s32.totalorder %s43, %s45
    %p52 = scmp.eq.s32.totalorder %s14, 1
    %p53 = por %p51, %p52
    %p54 = scmp.ne.s32.totalorder %s45, %s46
    %p55 = scmp.eq.s32.totalorder %s14, 0
    %p56 = por %p54, %p55
    %p57 = scmp.ne.s32.totalorder %s45, %s46
    %p58 = scmp.eq.s32.totalorder %s15, 1
    %p59 = por %p57, %p58
    %p61 = scmp.ne.s32.totalorder %s46, %s60
    %p62 = scmp.eq.s32.totalorder %s15, 0
    %p63 = por %p61, %p62
    %s65 = sadd.s32 %s64, 1
    %p68 = scmp.eq.s32.totalorder %s9, 1
    %p69 = scmp.ne.s32.totalorder %s64, %s66
    %p70 = scmp.eq.s32.totalorder %s9, 0
    %p71 = por %p69, %p70
    %p72 = scmp.ne.s32.totalorder %s64, %s66
    %p73 = scmp.eq.s32.totalorder %s14, 1
    %p74 = por %p72, %p73
    %p75 = scmp.ne.s32.totalorder %s66, %s67
    %p76 = scmp.eq.s32.totalorder %s14, 0
    %p77 = por %p75, %p76
    %p78 = scmp.ne.s32.totalorder %s66, %s67
    %p79 = scmp.eq.s32.totalorder %s15, 1
    %p80 = por %p78, %p79
    %p82 = scmp.ne.s32.totalorder %s67, %s81
    %p83 = scmp.eq.s32.totalorder %s15, 0
    %p84 = por %p82, %p83
    %s85 = ssub.s32 %s9, %s16
    %p86 = scmp.eq.s32.totalorder %s85, 0
    %s88 = sadd.s32 %s87, 1
    %s89 = scalar_select %p86, %s87, %s88
    %p92 = pneg %p86
    %p93 = scmp.eq.s32.totalorder %s9, 1
    %p94 = por %p92, %p93
    %p95 = scmp.ne.s32.totalorder %s87, %s90
    %p96 = scmp.eq.s32.totalorder %s9, 0
    %p97 = por %p95, %p96
    %p98 = scmp.ne.s32.totalorder %s87, %s90
    %p99 = scmp.eq.s32.totalorder %s14, 1
    %p100 = por %p98, %p99
    %p101 = scmp.ne.s32.totalorder %s90, %s91
    %p102 = scmp.eq.s32.totalorder %s14, 0
    %p103 = por %p101, %p102
    %p104 = scmp.ne.s32.totalorder %s90, %s91
    %p105 = scmp.eq.s32.totalorder %s15, 1
    %p106 = por %p104, %p105
    %p108 = scmp.ne.s32.totalorder %s91, %s107
    %p109 = scmp.eq.s32.totalorder %s15, 0
    %p110 = por %p108, %p109
    %p111 = scmp.le.s32.totalorder 1, %s9
    %p112 = scmp.lt.s32.totalorder %s9, 3
    %p113 = pnand %p111, %p112
    %p114 = pneg %p113
    // Predicated region
    $region9: #{ghost_module1.9} parent=5 // pred_check
      _
    $region10: #{ghost_module1.9} parent=5 // pred_check_branch
      %116 = sbr.rel (%p113) target = $region12
    $region11: #{ghost_module1.9} parent=5 // pred_region
      %s117 = ssub.s32 %s9, 1
      // Predicated region
      $region13: #{ghost_module1.9} parent=11 // pred_check
        %p118 = pneg %p56
      $region14: #{ghost_module1.9} parent=11 // pred_check_branch
        %120 = sbr.rel (%p118) target = $region16
      $region15: #{ghost_module1.9} parent=11 // pred_region
        _
      $region16: #{ghost_module1.9} parent=11 // pred_fallthru
        _
      // Predicated region
      $region17: #{ghost_module1.9} parent=11 // pred_check
        %p121 = pneg %p77
      $region18: #{ghost_module1.9} parent=11 // pred_check_branch
        %123 = sbr.rel (%p121) target = $region20
      $region19: #{ghost_module1.9} parent=11 // pred_region
        _
      $region20: #{ghost_module1.9} parent=11 // pred_fallthru
        _
    $region12: #{ghost_module1.9} parent=5 // pred_fallthru
      _
    %p124 = scmp.lt.s32.totalorder %s9, 2
    // Predicated region
    $region21: #{ghost_module1.9} parent=5 // pred_check
      %p125 = pneg %p124
    $region22: #{ghost_module1.9} parent=5 // pred_check_branch
      %127 = sbr.rel (%p125) target = $region24
    $region23: #{ghost_module1.9} parent=5 // pred_region
      // Predicated region
      $region25: #{ghost_module1.9} parent=23 // pred_check
        %p128 = pneg %p29
      $region26: #{ghost_module1.9} parent=23 // pred_check_branch
        %130 = sbr.rel (%p128) target = $region28
      $region27: #{ghost_module1.9} parent=23 // pred_region
        %p131 = scmp.lt.s32.totalorder %s9, 1
        %s132 = scalar_select %p131, %s9, 1
        %s133 = smul.addr %s132, 4
        %s134 = smul.addr %s133, 8
        %s135 = scalar_lea.vmem %s0, %s134
      $region28: #{ghost_module1.9} parent=23 // pred_fallthru
        _
    $region24: #{ghost_module1.9} parent=5 // pred_fallthru
      _
    %p136 = scmp.le.s32.totalorder 1, %s9
    %p137 = scmp.lt.s32.totalorder %s9, 3
    %p138 = pnand %p136, %p137
    %p139 = pneg %p138
    // Predicated region
    $region29: #{ghost_module1.9} parent=5 // pred_check
      _
    $region30: #{ghost_module1.9} parent=5 // pred_check_branch
      %141 = sbr.rel (%p138) target = $region32
    $region31: #{ghost_module1.9} parent=5 // pred_region
      %s142 = ssub.s32 %s9, 1
      %p143 = scmp.lt.s32.totalorder %s14, 1
      %s144 = scalar_select %p143, %s14, 1
      %s145 = smul.addr %s144, 4
      %s146 = smul.addr %s145, 8
      %s147 = scalar_lea.vmem %s0, %s146
      %p148 = pneg %p35
      %p149 = pneg %p32
      %p150 = pneg %p56
      %p151 = pneg %p53
      %p152 = pneg %p77
      %p153 = pneg %p74
      %p154 = pneg %p103
      %p155 = pneg %p100
      %p156 = scmp.lt.s32.totalorder %s14, 1
      %s157 = scalar_select %p156, %s14, 1
      %s158 = smul.addr %s157, 2
      %s159 = smul.addr %s158, 4
      %s160 = scalar_lea.vmem %s3, %s159
      %p161 = scmp.lt.s32.totalorder %s14, 1
      %s162 = scalar_select %p161, %s14, 1
      %s163 = smul.addr %s162, 4
      %s164 = smul.addr %s163, 8
      %s165 = scalar_lea.vmem %s0, %s164
      %p166 = scmp.lt.s32.totalorder %s14, 1
      %s167 = scalar_select %p166, %s14, 1
      %s168 = smul.addr %s167, 2
      %s169 = smul.addr %s168, 4
      %s170 = scalar_lea.vmem %s3, %s169
      %v171 = vld [vmem:[%s1] sm:$0xf]
      %v172 = vld [vmem:[%s165] sm:$0xff]
      %v173 = vld [vmem:[%s165 + $0x8] sm:$0xff]
      %v174 = vld [vmem:[%s165 + $0x10] sm:$0xf]
      %v175 = vld [vmem:[%s165 + $0x18] sm:$0xf]
      %v176 = vld [vmem:[%s2] sm:$0xf]
      %178 = vset.pattern.permute.xlu0 0
      %179 = vperm.xlu0 %178, %v176
      %v180 = vpop.permute.xlu0 %179
      %vm182 = vcmask 97280
      %v184 = vsel %vm182, %v171, 0
      %vm186 = vcmask 1043456
      %v188 = vsel %vm186, %v174, 0
      %v191 = vsel %vm186, %v175, 0
      %193 = vmatprep.subr.mxu0 %v173
      %194 = vmatpush1.msra.mxu0 %v172
      %195 = vmatprep.subr.mxu0 %v191
      %196 = vmatpush1.msra.mxu0 %v188
      %197 = vmatprep.subr.mxu0 0.0
      %198 = vmatpush1.msra.mxu0 0.0
      %199 = vmatprep.subr.mxu0 0.0
      %200 = vmatpush1.msra.mxu0 0.0
      %201 = vmatprep.subr.mxu0 0.0
      %202 = vmatpush1.msra.mxu0 0.0
      %203 = vmatprep.subr.mxu0 0.0
      %204 = vmatpush1.msra.mxu0 0.0
      %205 = vmatprep.subr.mxu0 0.0
      %206 = vmatpush1.msra.mxu0 0.0
      %207 = vmatprep.subr.mxu0 0.0
      %208 = vmatpush1.msra.mxu0 0.0
      %209 = vmatprep.subr.mxu0 0.0
      %210 = vmatpush1.msra.mxu0 0.0
      %211 = vmatprep.subr.mxu0 0.0
      %212 = vmatpush1.msra.mxu0 0.0
      %213 = vmatprep.subr.mxu0 0.0
      %214 = vmatpush1.msra.mxu0 0.0
      %215 = vmatprep.subr.mxu0 0.0
      %216 = vmatpush1.msra.mxu0 0.0
      %217 = vmatprep.subr.mxu0 0.0
      %218 = vmatpush1.msra.mxu0 0.0
      %219 = vmatprep.subr.mxu0 0.0
      %220 = vmatpush1.msra.mxu0 0.0
      %221 = vmatprep.subr.mxu0 0.0
      %222 = vmatpush1.msra.mxu0 0.0
      %223 = vmatprep.subr.mxu0 0.0
      %224 = vmatpush1.msra.mxu0 0.0
      %225 = vmatprep.subr.mxu0 0.0
      %226 = vmatpush1.msra.mxu0 0.0
      %227 = vmatprep.subr.mxu0 0.0
      %228 = vmatpush1.msra.mxu0 0.0
      %229 = vmatprep.subr.mxu0 0.0
      %230 = vmatpush1.msra.mxu0 0.0
      %231 = vmatprep.subr.mxu0 0.0
      %232 = vmatpush1.msra.mxu0 0.0
      %233 = vmatprep.subr.mxu0 0.0
      %234 = vmatpush1.msra.mxu0 0.0
      %235 = vmatprep.subr.mxu0 0.0
      %236 = vmatpush1.msra.mxu0 0.0
      %237 = vmatprep.subr.mxu0 0.0
      %238 = vmatpush1.msra.mxu0 0.0
      %239 = vmatprep.subr.mxu0 0.0
      %240 = vmatpush1.msra.mxu0 0.0
      %241 = vmatprep.subr.mxu0 0.0
      %242 = vmatpush1.msra.mxu0 0.0
      %243 = vmatprep.subr.mxu0 0.0
      %244 = vmatpush1.msra.mxu0 0.0
      %245 = vmatprep.subr.mxu0 0.0
      %246 = vmatpush1.msra.mxu0 0.0
      %247 = vmatprep.subr.mxu0 0.0
      %248 = vmatpush1.msra.mxu0 0.0
      %249 = vmatprep.subr.mxu0 0.0
      %250 = vmatpush1.msra.mxu0 0.0
      %251 = vmatprep.subr.mxu0 0.0
      %252 = vmatpush1.msra.mxu0 0.0
      %253 = vmatprep.subr.mxu0 0.0
      %254 = vmatpush1.msra.mxu0 0.0
      %255 = vmatprep.subr.mxu0 0.0
      %256 = vmatpush1.msra.mxu0 0.0
      %257 = vmatprep.mubr.f32.mxu0 0.0
      %258 = vmatmul.mubr.f32.gmra.mrb[0].mxu0 %v184
      %v259 = vpop.f32.mrb[0].mxu0
      %v260 = vadd.f32 %v180, %v259
      %v261 = vpop.f32.mrb[0].mxu0
      %v262 = vadd.f32 %v180, %v261
      %263 = vdwg.mxu0
      %v266 = vcombine.low %v260, %v262
      %268 = vst [vmem:[%s170] sm:$0xff] %v266
      %p269 = scmp.lt.s32.totalorder %s14, 1
      %s270 = scalar_select %p269, %s14, 1
      %s271 = smul.addr %s270, 2
      %s272 = smul.addr %s271, 4
      %s273 = scalar_lea.vmem %s3, %s272
      // Predicated region
      $region33: #{ghost_module1.9} parent=31 // pred_check
        %p274 = pneg %p100
      $region34: #{ghost_module1.9} parent=31 // pred_check_branch
        %276 = sbr.rel (%p274) target = $region36
      $region35: #{ghost_module1.9} parent=31 // pred_region
        _
      $region36: #{ghost_module1.9} parent=31 // pred_fallthru
        _
    $region32: #{ghost_module1.9} parent=5 // pred_fallthru
      _
    %p277 = scmp.le.s32.totalorder 2, %s9
    // Predicated region
    $region37: #{ghost_module1.9} parent=5 // pred_check
      %p278 = pneg %p277
    $region38: #{ghost_module1.9} parent=5 // pred_check_branch
      %280 = sbr.rel (%p278) target = $region40
    $region39: #{ghost_module1.9} parent=5 // pred_region
      %s281 = ssub.s32 %s9, 2
      // Predicated region
      $region41: #{ghost_module1.9} parent=39 // pred_check
        %p282 = pneg %p106
      $region42: #{ghost_module1.9} parent=39 // pred_check_branch
        %284 = sbr.rel (%p282) target = $region44
      $region43: #{ghost_module1.9} parent=39 // pred_region
        %p285 = scmp.lt.s32.totalorder %s15, 1
        %s286 = scalar_select %p285, %s15, 1
        %s287 = smul.addr %s286, 2
        %s288 = smul.addr %s287, 4
        %s289 = scalar_lea.vmem %s3, %s288
      $region44: #{ghost_module1.9} parent=39 // pred_fallthru
        _
    $region40: #{ghost_module1.9} parent=5 // pred_fallthru
      _
  $region6: #{ghost_module1.9} parent=0 // loop_footer
    %s13 = sadd.s32 1, %s9
  $region7: #{ghost_module1.9} parent=0 // loop_footer_branch
    %8 = sbr.rel target = $region3
  $region8: #{ghost_module1.9} parent=0 // loop_exit
    _

</llo_original>
